<compile_context>
chip_gen: v6e
topology: v6e:2x2x1
jax: 0.10.0
libtpu: 0.0.40
codegen_flags: <defaults>
</compile_context>

<pallas_src>
from functools import partial

import numpy as np
import jax
import jax.numpy as jnp
from jax.experimental import pallas as pl
from jax.experimental.pallas import tpu as pltpu

PI = 3.141592653589793


def _atan(z):
    """float32 arctan built from mul/add/select + a SINGLE EUP reciprocal
    (Cephes-style), guaranteed to lower in Mosaic.  Max error ~1e-6."""
    a = jnp.abs(z)
    big = a > 2.414213562373095       # tan(3*pi/8)
    mid = a > 0.4142135623730950      # tan(pi/8); big implies mid
    base = jnp.where(big, PI / 2.0, jnp.where(mid, PI / 4.0, 0.0))
    num = jnp.where(big, -1.0, a - 1.0)
    den = jnp.where(big, a, a + 1.0)          # >= 1 unless big (then > 2.4)
    frac = num * pl.reciprocal(den, approx=True)
    xr = jnp.where(mid, frac, a)
    zz = xr * xr
    poly = (((8.05374449538e-2 * zz - 1.38776856032e-1) * zz
             + 1.99777106478e-1) * zz - 3.33329491539e-1) * zz * xr + xr
    res = base + poly
    return jnp.where(z < 0, -res, res)


def cone_intersection_kernel(
    axis_ref, arg_ref,
    w1_ref, b1_ref,
    w2ax_ref, b2ax_ref,
    w2ar_ref, b2ar_ref,
    axis_out_ref, arg_out_ref,
    lhs_ref,                     # VMEM scratch: (N*TB, 2*Dp) bf16
):
    n, tb, d = axis_ref.shape
    dp = w1_ref.shape[1] // 2
    bf16 = jnp.bfloat16

    axis = axis_ref[...]                 # (N, TB, D) f32
    arg = arg_ref[...]                   # (N, TB, D) f32

    diff = axis - arg
    summ = axis + arg

    # Assemble the lane-dense bf16 matmul LHS  [diff | 0 | summ | 0]  in VMEM.
    # Zero every iteration (pad columns multiply zero weight rows, but stale
    # VMEM could hold inf/nan patterns; re-zeroing also stays correct if the
    # parallel grid axis is sharded across TensorCores).
    lhs_ref[...] = jnp.zeros_like(lhs_ref)
    lhs_ref[:, :d] = diff.reshape(n * tb, d).astype(bf16)
    lhs_ref[:, dp:dp + d] = summ.reshape(n * tb, d).astype(bf16)

    # Fused layer_axis1 + layer_arg1: one MXU dot (K stacked), f32 accumulate,
    # bias, ReLU, then immediately down-cast to bf16 (halves the big temps).
    h1 = jnp.dot(lhs_ref[...], w1_ref[...],
                 preferred_element_type=jnp.float32) + b1_ref[...]
    h1 = jnp.maximum(h1, 0.0).astype(bf16)          # (N*TB, 2*Dp) bf16
    ax1 = h1[:, :dp]                                # lane-tile-aligned slices
    ar1 = h1[:, dp:]

    # layer_axis2 (Dp -> D, unpadded output width) + softmax over the set axis.
    ax2 = (jnp.dot(ax1, w2ax_ref[...], preferred_element_type=jnp.float32)
           + b2ax_ref[...]).reshape(n, tb, d)
    m = jnp.max(ax2, axis=0, keepdims=True)
    e = jnp.exp(ax2 - m)                            # (N, TB, D)

    # Deferred normalization: reduce un-normalized weights against cos/sin,
    # divide once by the shared denominator (attention never materialized).
    denom = jnp.sum(e, axis=0)                      # (TB, D)
    xs = jnp.sum(e * jnp.cos(axis), axis=0)
    ys = jnp.sum(e * jnp.sin(axis), axis=0)
    inv_den = pl.reciprocal(denom, approx=True)
    x_emb = xs * inv_den
    y_emb = ys * inv_den
    x_emb = jnp.where(jnp.abs(x_emb) < 0.001, 0.001, x_emb)

    ax_out = _atan(y_emb * pl.reciprocal(x_emb, approx=True))
    ind_x = x_emb < 0
    ind_y = y_emb < 0
    ax_out = jnp.where(ind_x & jnp.logical_not(ind_y), ax_out + PI, ax_out)
    ax_out = jnp.where(ind_x & ind_y, ax_out - PI, ax_out)

    # arg path: mean over the set axis (f32 accumulate), layer_arg2, sigmoid.
    ar1_sum = jnp.sum(ar1.reshape(n, tb, dp).astype(jnp.float32), axis=0)
    ar1_mean = (ar1_sum * (1.0 / n)).astype(bf16)   # (TB, Dp)
    gate_pre = (jnp.dot(ar1_mean, w2ar_ref[...],
                        preferred_element_type=jnp.float32) + b2ar_ref[...])
    gate = pl.reciprocal(1.0 + jnp.exp(-gate_pre), approx=True)

    # dropout == identity (eval); min over set axis; apply gate.
    arg_min = jnp.min(arg, axis=0)                  # (TB, D)

    axis_out_ref[...] = ax_out.astype(axis_out_ref.dtype)
    arg_out_ref[...] = (arg_min * gate).astype(arg_out_ref.dtype)


def _round_up(x, m):
    return ((x + m - 1) // m) * m


def _vmem_budget_and_limit():
    """Per-generation VMEM numbers: tile budget ~ cap/2, scoped limit ~ 3*cap/4
    (=> 32/48 MiB on v7x's 64 MiB, 64/96 MiB on v5e/v6e's 128 MiB)."""
    cap = 64 * 1024 * 1024            # safe fallback (v7x-sized)
    try:
        cap = int(pltpu.get_tpu_info().vmem_capacity_bytes)
    except Exception:
        pass
    budget = cap // 2
    limit = (3 * cap) // 4
    budget = max(min(budget, 64 * 1024 * 1024), 16 * 1024 * 1024)
    limit = max(min(limit, 100 * 1024 * 1024), 32 * 1024 * 1024)
    return budget, limit


def _choose_tb(n, b, d, dp, budget):
    """Largest batch tile fitting the VMEM budget.  Per-row estimate covers the
    double-buffered f32 inputs/outputs plus the dominant intermediates (bf16
    LHS scratch, f32/bf16 h1, softmax/cos/sin temps) with ~1.7x headroom."""
    per_row = n * (60 * d + 30 * dp) + 32 * d
    tb = budget // max(per_row, 1)
    if tb >= b:
        if b >= 16:
            # Whole batch fits, but keep >= 2 grid steps so the "parallel"
            # axis can shard across v7x's two TensorCores.
            return min(_round_up((b + 1) // 2, 8), b)
        return b
    return min(max((tb // 8) * 8, 8), b)


def prepare_params(params, dim):
    """One-time weight preprocessing (hoisted out of the per-call path):
    stack the diff/summ halves of both layer-1 weights along K into one fused
    (2*Dp, 2*Dp) matrix (axis outputs in cols [0:D], arg outputs in
    cols [Dp:Dp+D]), transpose everything to `x @ Wt`, lane-pad only the
    dimensions that must be lane-dense inside the kernel, and cast matmul
    weights to bf16 (biases stay f32)."""
    d = dim
    dp = _round_up(max(d, 1), 128)
    f32 = jnp.float32

    # rows [0:d]     multiply diff = axis - arg
    # rows [dp:dp+d] multiply summ = axis + arg
    w1 = jnp.zeros((2 * dp, 2 * dp), f32)
    w1 = w1.at[:d, :d].set(params["w_axis1"][:, :d].T)
    w1 = w1.at[:d, dp:dp + d].set(params["w_arg1"][:, :d].T)
    w1 = w1.at[dp:dp + d, :d].set(params["w_axis1"][:, d:].T)
    w1 = w1.at[dp:dp + d, dp:dp + d].set(params["w_arg1"][:, d:].T)
    b1 = jnp.zeros((1, 2 * dp), f32)
    b1 = b1.at[0, :d].set(params["b_axis1"])
    b1 = b1.at[0, dp:dp + d].set(params["b_arg1"])

    # Layer-2: lane-padded K (matches the lane-dense h1 slices), unpadded
    # output width D (the elementwise tail and outputs stay unpadded).
    w2ax = jnp.zeros((dp, d), f32).at[:d, :].set(params["w_axis2"].T)
    w2ar = jnp.zeros((dp, d), f32).at[:d, :].set(params["w_arg2"].T)
    b2ax = params["b_axis2"].reshape(1, d).astype(f32)
    b2ar = params["b_arg2"].reshape(1, d).astype(f32)

    bf16 = jnp.bfloat16
    return {"w1": w1.astype(bf16), "b1": b1,
            "w2ax": w2ax.astype(bf16), "b2ax": b2ax,
            "w2ar": w2ar.astype(bf16), "b2ar": b2ar}


@partial(jax.jit, static_argnames=("tb", "vmem_limit"))
def _cone_intersection_impl(axis_emb, arg_emb, w1, b1, w2ax, b2ax, w2ar, b2ar,
                            *, tb, vmem_limit):
    n, b, d = axis_emb.shape
    dp = w1.shape[1] // 2

    def full_spec(shape):
        return pl.BlockSpec(shape, lambda i: (0,) * len(shape))

    axis_out, arg_out = pl.pallas_call(
        cone_intersection_kernel,
        out_shape=(jax.ShapeDtypeStruct((b, d), jnp.float32),
                   jax.ShapeDtypeStruct((b, d), jnp.float32)),
        grid=(pl.cdiv(b, tb),),
        in_specs=[
            pl.BlockSpec((n, tb, d), lambda i: (0, i, 0)),
            pl.BlockSpec((n, tb, d), lambda i: (0, i, 0)),
            full_spec(w1.shape), full_spec(b1.shape),
            full_spec(w2ax.shape), full_spec(b2ax.shape),
            full_spec(w2ar.shape), full_spec(b2ar.shape),
        ],
        out_specs=(pl.BlockSpec((tb, d), lambda i: (i, 0)),
                   pl.BlockSpec((tb, d), lambda i: (i, 0))),
        scratch_shapes=[pltpu.VMEM((n * tb, 2 * dp), jnp.bfloat16)],
        compiler_params=pltpu.CompilerParams(
            dimension_semantics=("parallel",),       # megacore shard on v7x
            vmem_limit_bytes=vmem_limit),
    )(axis_emb, arg_emb, w1, b1, w2ax, b2ax, w2ar, b2ar)
    return axis_out, arg_out


def cone_intersection(axis_emb, arg_emb, prep):
    n, b, d = axis_emb.shape
    dp = prep["w1"].shape[1] // 2
    budget, vmem_limit = _vmem_budget_and_limit()
    tb = _choose_tb(n, b, d, dp, budget)
    return _cone_intersection_impl(
        axis_emb, arg_emb,
        prep["w1"], prep["b1"],
        prep["w2ax"], prep["b2ax"], prep["w2ar"], prep["b2ar"],
        tb=tb, vmem_limit=vmem_limit)


def cone_intersection_ref(axis_emb, arg_emb, p):
    """Plain-JAX f32 reference mirroring the PyTorch forward (eval mode)."""
    logits = jnp.concatenate([axis_emb - arg_emb, axis_emb + arg_emb], axis=-1)
    ax1 = jax.nn.relu(logits @ p["w_axis1"].T + p["b_axis1"])
    attn = jax.nn.softmax(ax1 @ p["w_axis2"].T + p["b_axis2"], axis=0)
    x = jnp.sum(attn * jnp.cos(axis_emb), axis=0)
    y = jnp.sum(attn * jnp.sin(axis_emb), axis=0)
    x = jnp.where(jnp.abs(x) < 0.001, 0.001, x)
    ax = jnp.arctan(y / x)
    ix, iy = x < 0, y < 0
    ax = jnp.where(ix & ~iy, ax + PI, ax)
    ax = jnp.where(ix & iy, ax - PI, ax)
    ar1 = jax.nn.relu(logits @ p["w_arg1"].T + p["b_arg1"])
    gate = jax.nn.sigmoid(jnp.mean(ar1, axis=0) @ p["w_arg2"].T + p["b_arg2"])
    return ax, jnp.min(arg_emb, axis=0) * gate


def init_params(key, dim):
    ks = jax.random.split(key, 8)

    def xavier(k, shape):                 # nn.init.xavier_uniform_
        fan_out, fan_in = shape
        bound = float(np.sqrt(6.0 / (fan_in + fan_out)))
        return jax.random.uniform(k, shape, jnp.float32, -bound, bound)

    def default_bias(k, fan_in):          # default nn.Linear bias init
        bound = float(1.0 / np.sqrt(fan_in))
        return jax.random.uniform(k, (dim,), jnp.float32, -bound, bound)

    return {
        "w_axis1": xavier(ks[0], (dim, 2 * dim)), "b_axis1": default_bias(ks[1], 2 * dim),
        "w_arg1":  xavier(ks[2], (dim, 2 * dim)), "b_arg1":  default_bias(ks[3], 2 * dim),
        "w_axis2": xavier(ks[4], (dim, dim)),     "b_axis2": default_bias(ks[5], dim),
        "w_arg2":  xavier(ks[6], (dim, dim)),     "b_arg2":  default_bias(ks[7], dim),
    }


if __name__ == "__main__":
    N, B, D = 4, 2, 32   # num_conjuncts, batch, embedding dim (small test shape)
    key = jax.random.PRNGKey(0)
    k_ax, k_arg, k_p = jax.random.split(key, 3)

    # ConE: axis angles in [-pi, pi], apertures in [0, pi]
    axis_emb = jax.random.uniform(k_ax, (N, B, D), jnp.float32, -PI, PI)
    arg_emb = jax.random.uniform(k_arg, (N, B, D), jnp.float32, 0.0, PI)
    params = init_params(k_p, D)
    prep = prepare_params(params, D)      # one-time weight prep (hoisted)

    axis_out, arg_out = cone_intersection(axis_emb, arg_emb, prep)
    axis_out = jax.block_until_ready(axis_out)
    arg_out = jax.block_until_ready(arg_out)

    axis_ref, arg_ref = cone_intersection_ref(axis_emb, arg_emb, params)
    assert axis_out.shape == (B, D) and arg_out.shape == (B, D)
    assert bool(jnp.all(jnp.isfinite(axis_out))) and bool(jnp.all(jnp.isfinite(arg_out)))
    # axis outputs are angles: compare modulo 2*pi (the +/-pi branch cut may
    # flip under bf16/approx-reciprocal rounding without being a real error).
    ang_err = np.abs(((np.asarray(axis_out) - np.asarray(axis_ref) + PI) % (2 * PI)) - PI)
    assert ang_err.max() < 1e-1, f"axis angular error {ang_err.max()}"
    np.testing.assert_allclose(np.asarray(arg_out), np.asarray(arg_ref),
                               rtol=1e-1, atol=1e-1)

    print("KERNEL_OK")
</pallas_src>

<mosaic_0001>
module attributes {stable_mosaic.version = 11 : i64} {
  func.func @cone_intersection_kernel(%arg0: i32, %arg1: memref<4x2x32xf32, #tpu.memory_space<vmem>>, %arg2: memref<4x2x32xf32, #tpu.memory_space<vmem>>, %arg3: memref<256x256xbf16, #tpu.memory_space<vmem>>, %arg4: memref<1x256xf32, #tpu.memory_space<vmem>>, %arg5: memref<128x32xbf16, #tpu.memory_space<vmem>>, %arg6: memref<1x32xf32, #tpu.memory_space<vmem>>, %arg7: memref<128x32xbf16, #tpu.memory_space<vmem>>, %arg8: memref<1x32xf32, #tpu.memory_space<vmem>>, %arg9: memref<2x32xf32, #tpu.memory_space<vmem>>, %arg10: memref<2x32xf32, #tpu.memory_space<vmem>>, %arg11: memref<8x256xbf16, #tpu.memory_space<vmem>>) attributes {dimension_semantics = [#tpu.dimension_semantics<parallel>], iteration_bounds = array<i64: 1>, scalar_prefetch = 0 : i64, scratch_operands = 1 : i64, tpu.core_type = #tpu.core_type<tc>, window_params = [{transform_indices = @transform_0, window_bounds = array<i64: 4, 2, 32>}, {transform_indices = @transform_1, window_bounds = array<i64: 4, 2, 32>}, {pipeline_mode = #tpu.pipeline_mode<synchronous>, transform_indices = @transform_2, window_bounds = array<i64: 256, 256>}, {pipeline_mode = #tpu.pipeline_mode<synchronous>, transform_indices = @transform_3, window_bounds = array<i64: 1, 256>}, {pipeline_mode = #tpu.pipeline_mode<synchronous>, transform_indices = @transform_4, window_bounds = array<i64: 128, 32>}, {pipeline_mode = #tpu.pipeline_mode<synchronous>, transform_indices = @transform_5, window_bounds = array<i64: 1, 32>}, {pipeline_mode = #tpu.pipeline_mode<synchronous>, transform_indices = @transform_6, window_bounds = array<i64: 128, 32>}, {pipeline_mode = #tpu.pipeline_mode<synchronous>, transform_indices = @transform_7, window_bounds = array<i64: 1, 32>}, {transform_indices = @transform_8, window_bounds = array<i64: 2, 32>}, {transform_indices = @transform_9, window_bounds = array<i64: 2, 32>}]} {
    %c0 = arith.constant 0 : index
    %c0_0 = arith.constant 0 : index
    %c0_1 = arith.constant 0 : index
    %0 = vector.load %arg1[%c0, %c0_0, %c0_1] : memref<4x2x32xf32, #tpu.memory_space<vmem>>, vector<4x2x32xf32>
    %c0_2 = arith.constant 0 : index
    %c0_3 = arith.constant 0 : index
    %c0_4 = arith.constant 0 : index
    %1 = vector.load %arg2[%c0_2, %c0_3, %c0_4] : memref<4x2x32xf32, #tpu.memory_space<vmem>>, vector<4x2x32xf32>
    %2 = arith.subf %0, %1 : vector<4x2x32xf32>
    %3 = arith.addf %0, %1 : vector<4x2x32xf32>
    %cst = arith.constant 0.000000e+00 : bf16
    %4 = vector.broadcast %cst : bf16 to vector<8x256xbf16>
    %c0_5 = arith.constant 0 : index
    %c0_6 = arith.constant 0 : index
    %5 = vector.load %arg11[%c0_5, %c0_6] : memref<8x256xbf16, #tpu.memory_space<vmem>>, vector<8x256xbf16>
    tpu.vector_store %arg11[%c0_5, %c0_6], %4 {strides = array<i32>} : memref<8x256xbf16, #tpu.memory_space<vmem>>, vector<8x256xbf16>,
    %6 = vector.shape_cast %2 : vector<4x2x32xf32> to vector<8x32xf32>
    %7 = arith.truncf %6 : vector<8x32xf32> to vector<8x32xbf16>
    %c0_7 = arith.constant 0 : index
    %c0_8 = arith.constant 0 : index
    %8 = vector.load %arg11[%c0_7, %c0_8] : memref<8x256xbf16, #tpu.memory_space<vmem>>, vector<8x32xbf16>
    tpu.vector_store %arg11[%c0_7, %c0_8], %7 {strides = array<i32>} : memref<8x256xbf16, #tpu.memory_space<vmem>>, vector<8x32xbf16>,
    %9 = vector.shape_cast %3 : vector<4x2x32xf32> to vector<8x32xf32>
    %10 = arith.truncf %9 : vector<8x32xf32> to vector<8x32xbf16>
    %c0_9 = arith.constant 0 : index
    %c128 = arith.constant 128 : index
    %11 = vector.load %arg11[%c0_9, %c128] : memref<8x256xbf16, #tpu.memory_space<vmem>>, vector<8x32xbf16>
    tpu.vector_store %arg11[%c0_9, %c128], %10 {strides = array<i32>} : memref<8x256xbf16, #tpu.memory_space<vmem>>, vector<8x32xbf16>,
    %c0_10 = arith.constant 0 : index
    %c0_11 = arith.constant 0 : index
    %12 = vector.load %arg11[%c0_10, %c0_11] : memref<8x256xbf16, #tpu.memory_space<vmem>>, vector<8x256xbf16>
    %c0_12 = arith.constant 0 : index
    %c0_13 = arith.constant 0 : index
    %13 = vector.load %arg3[%c0_12, %c0_13] : memref<256x256xbf16, #tpu.memory_space<vmem>>, vector<256x256xbf16>
    %cst_14 = arith.constant dense<0.000000e+00> : vector<8x256xf32>
    %14 = tpu.matmul %12, %13, %cst_14 {dimension_numbers = #tpu.dot_dimension_numbers<[1], [0], [0], [1], [0, 0, 1, 1], [], []>} : vector<8x256xbf16>, vector<256x256xbf16>, vector<8x256xf32> -> vector<8x256xf32>
    %c0_15 = arith.constant 0 : index
    %c0_16 = arith.constant 0 : index
    %15 = vector.load %arg4[%c0_15, %c0_16] : memref<1x256xf32, #tpu.memory_space<vmem>>, vector<1x256xf32>
    %16 = vector.broadcast %15 : vector<1x256xf32> to vector<8x256xf32>
    %17 = arith.addf %14, %16 : vector<8x256xf32>
    %cst_17 = arith.constant 0.000000e+00 : f32
    %18 = vector.broadcast %cst_17 : f32 to vector<8x256xf32>
    %19 = arith.maximumf %17, %18 : vector<8x256xf32>
    %20 = arith.truncf %19 : vector<8x256xf32> to vector<8x256xbf16>
    %21 = vector.extract_strided_slice %20 {offsets = [0, 0], sizes = [8, 128], strides = [1, 1]} : vector<8x256xbf16> to vector<8x128xbf16>
    %22 = vector.extract_strided_slice %20 {offsets = [0, 128], sizes = [8, 128], strides = [1, 1]} : vector<8x256xbf16> to vector<8x128xbf16>
    %c0_18 = arith.constant 0 : index
    %c0_19 = arith.constant 0 : index
    %23 = vector.load %arg5[%c0_18, %c0_19] : memref<128x32xbf16, #tpu.memory_space<vmem>>, vector<128x32xbf16>
    %cst_20 = arith.constant dense<0.000000e+00> : vector<8x32xf32>
    %24 = tpu.matmul %21, %23, %cst_20 {dimension_numbers = #tpu.dot_dimension_numbers<[1], [0], [0], [1], [0, 0, 1, 1], [], []>} : vector<8x128xbf16>, vector<128x32xbf16>, vector<8x32xf32> -> vector<8x32xf32>
    %c0_21 = arith.constant 0 : index
    %c0_22 = arith.constant 0 : index
    %25 = vector.load %arg6[%c0_21, %c0_22] : memref<1x32xf32, #tpu.memory_space<vmem>>, vector<1x32xf32>
    %26 = vector.broadcast %25 : vector<1x32xf32> to vector<8x32xf32>
    %27 = arith.addf %24, %26 : vector<8x32xf32>
    %28 = vector.shape_cast %27 : vector<8x32xf32> to vector<4x2x32xf32>
    %cst_23 = arith.constant dense<0xFF800000> : vector<2x32xf32>
    %29 = vector.multi_reduction <maximumf>, %28, %cst_23 [0] : vector<4x2x32xf32> to vector<2x32xf32>
    %30 = vector.shape_cast %29 : vector<2x32xf32> to vector<1x2x32xf32>
    %31 = vector.broadcast %30 : vector<1x2x32xf32> to vector<4x2x32xf32>
    %32 = arith.subf %28, %31 : vector<4x2x32xf32>
    %33 = math.exp %32 : vector<4x2x32xf32>
    %cst_24 = arith.constant dense<0.000000e+00> : vector<2x32xf32>
    %34 = vector.multi_reduction <add>, %33, %cst_24 [0] : vector<4x2x32xf32> to vector<2x32xf32>
    %35 = math.cos %0 : vector<4x2x32xf32>
    %36 = arith.mulf %33, %35 : vector<4x2x32xf32>
    %cst_25 = arith.constant dense<0.000000e+00> : vector<2x32xf32>
    %37 = vector.multi_reduction <add>, %36, %cst_25 [0] : vector<4x2x32xf32> to vector<2x32xf32>
    %38 = math.sin %0 : vector<4x2x32xf32>
    %39 = arith.mulf %33, %38 : vector<4x2x32xf32>
    %cst_26 = arith.constant dense<0.000000e+00> : vector<2x32xf32>
    %40 = vector.multi_reduction <add>, %39, %cst_26 [0] : vector<4x2x32xf32> to vector<2x32xf32>
    %41 = tpu.reciprocal %34 {approx = true} : vector<2x32xf32> -> vector<2x32xf32>
    %42 = arith.mulf %37, %41 : vector<2x32xf32>
    %43 = arith.mulf %40, %41 : vector<2x32xf32>
    %44 = math.absf %42 : vector<2x32xf32>
    %cst_27 = arith.constant 1.000000e-03 : f32
    %45 = vector.broadcast %cst_27 : f32 to vector<2x32xf32>
    %46 = arith.cmpf olt, %44, %45 : vector<2x32xf32>
    %cst_28 = arith.constant 1.000000e-03 : f32
    %47 = vector.broadcast %cst_28 : f32 to vector<2x32xf32>
    %48 = arith.select %46, %47, %42 : vector<2x32xi1>, vector<2x32xf32>
    %49 = tpu.reciprocal %48 {approx = true} : vector<2x32xf32> -> vector<2x32xf32>
    %50 = arith.mulf %43, %49 : vector<2x32xf32>
    %51 = math.absf %50 : vector<2x32xf32>
    %cst_29 = arith.constant 2.41421366 : f32
    %52 = vector.broadcast %cst_29 : f32 to vector<2x32xf32>
    %53 = arith.cmpf ogt, %51, %52 : vector<2x32xf32>
    %cst_30 = arith.constant 0.414213568 : f32
    %54 = vector.broadcast %cst_30 : f32 to vector<2x32xf32>
    %55 = arith.cmpf ogt, %51, %54 : vector<2x32xf32>
    %cst_31 = arith.constant 0.785398185 : f32
    %cst_32 = arith.constant 0.000000e+00 : f32
    %56 = vector.broadcast %cst_31 : f32 to vector<2x32xf32>
    %57 = vector.broadcast %cst_32 : f32 to vector<2x32xf32>
    %58 = arith.select %55, %56, %57 : vector<2x32xi1>, vector<2x32xf32>
    %cst_33 = arith.constant 1.57079637 : f32
    %59 = vector.broadcast %cst_33 : f32 to vector<2x32xf32>
    %60 = arith.select %53, %59, %58 : vector<2x32xi1>, vector<2x32xf32>
    %cst_34 = arith.constant 1.000000e+00 : f32
    %61 = vector.broadcast %cst_34 : f32 to vector<2x32xf32>
    %62 = arith.subf %51, %61 : vector<2x32xf32>
    %cst_35 = arith.constant -1.000000e+00 : f32
    %63 = vector.broadcast %cst_35 : f32 to vector<2x32xf32>
    %64 = arith.select %53, %63, %62 : vector<2x32xi1>, vector<2x32xf32>
    %cst_36 = arith.constant 1.000000e+00 : f32
    %65 = vector.broadcast %cst_36 : f32 to vector<2x32xf32>
    %66 = arith.addf %51, %65 : vector<2x32xf32>
    %67 = arith.select %53, %51, %66 : vector<2x32xi1>, vector<2x32xf32>
    %68 = tpu.reciprocal %67 {approx = true} : vector<2x32xf32> -> vector<2x32xf32>
    %69 = arith.mulf %64, %68 : vector<2x32xf32>
    %70 = arith.select %55, %69, %51 : vector<2x32xi1>, vector<2x32xf32>
    %71 = arith.mulf %70, %70 : vector<2x32xf32>
    %cst_37 = arith.constant 0.0805374458 : f32
    %72 = vector.broadcast %cst_37 : f32 to vector<2x32xf32>
    %73 = arith.mulf %72, %71 : vector<2x32xf32>
    %cst_38 = arith.constant 0.138776854 : f32
    %74 = vector.broadcast %cst_38 : f32 to vector<2x32xf32>
    %75 = arith.subf %73, %74 : vector<2x32xf32>
    %76 = arith.mulf %75, %71 : vector<2x32xf32>
    %cst_39 = arith.constant 0.199777111 : f32
    %77 = vector.broadcast %cst_39 : f32 to vector<2x32xf32>
    %78 = arith.addf %76, %77 : vector<2x32xf32>
    %79 = arith.mulf %78, %71 : vector<2x32xf32>
    %cst_40 = arith.constant 0.333329499 : f32
    %80 = vector.broadcast %cst_40 : f32 to vector<2x32xf32>
    %81 = arith.subf %79, %80 : vector<2x32xf32>
    %82 = arith.mulf %81, %71 : vector<2x32xf32>
    %83 = arith.mulf %82, %70 : vector<2x32xf32>
    %84 = arith.addf %83, %70 : vector<2x32xf32>
    %85 = arith.addf %60, %84 : vector<2x32xf32>
    %cst_41 = arith.constant 0.000000e+00 : f32
    %86 = vector.broadcast %cst_41 : f32 to vector<2x32xf32>
    %87 = arith.cmpf olt, %50, %86 : vector<2x32xf32>
    %cst_42 = arith.constant 0.000000e+00 : f32
    %88 = vector.broadcast %cst_42 : f32 to vector<2x32xf32>
    %89 = arith.subf %88, %85 : vector<2x32xf32>
    %90 = arith.select %87, %89, %85 : vector<2x32xi1>, vector<2x32xf32>
    %cst_43 = arith.constant 0.000000e+00 : f32
    %91 = vector.broadcast %cst_43 : f32 to vector<2x32xf32>
    %92 = arith.cmpf olt, %48, %91 : vector<2x32xf32>
    %cst_44 = arith.constant 0.000000e+00 : f32
    %93 = vector.broadcast %cst_44 : f32 to vector<2x32xf32>
    %94 = arith.cmpf olt, %43, %93 : vector<2x32xf32>
    %cst_45 = arith.constant dense<true> : vector<2x32xi1>
    %95 = arith.xori %94, %cst_45 : vector<2x32xi1>
    %96 = arith.andi %92, %95 : vector<2x32xi1>
    %cst_46 = arith.constant 3.14159274 : f32
    %97 = vector.broadcast %cst_46 : f32 to vector<2x32xf32>
    %98 = arith.addf %90, %97 : vector<2x32xf32>
    %99 = arith.select %96, %98, %90 : vector<2x32xi1>, vector<2x32xf32>
    %100 = arith.andi %92, %94 : vector<2x32xi1>
    %cst_47 = arith.constant 3.14159274 : f32
    %101 = vector.broadcast %cst_47 : f32 to vector<2x32xf32>
    %102 = arith.subf %99, %101 : vector<2x32xf32>
    %103 = arith.select %100, %102, %99 : vector<2x32xi1>, vector<2x32xf32>
    %104 = vector.shape_cast %22 : vector<8x128xbf16> to vector<4x2x128xbf16>
    %105 = arith.extf %104 : vector<4x2x128xbf16> to vector<4x2x128xf32>
    %cst_48 = arith.constant dense<0.000000e+00> : vector<2x128xf32>
    %106 = vector.multi_reduction <add>, %105, %cst_48 [0] : vector<4x2x128xf32> to vector<2x128xf32>
    %cst_49 = arith.constant 2.500000e-01 : f32
    %107 = vector.broadcast %cst_49 : f32 to vector<2x128xf32>
    %108 = arith.mulf %106, %107 : vector<2x128xf32>
    %109 = arith.truncf %108 : vector<2x128xf32> to vector<2x128xbf16>
    %c0_50 = arith.constant 0 : index
    %c0_51 = arith.constant 0 : index
    %110 = vector.load %arg7[%c0_50, %c0_51] : memref<128x32xbf16, #tpu.memory_space<vmem>>, vector<128x32xbf16>
    %cst_52 = arith.constant dense<0.000000e+00> : vector<2x32xf32>
    %111 = tpu.matmul %109, %110, %cst_52 {dimension_numbers = #tpu.dot_dimension_numbers<[1], [0], [0], [1], [0, 0, 1, 1], [], []>} : vector<2x128xbf16>, vector<128x32xbf16>, vector<2x32xf32> -> vector<2x32xf32>
    %c0_53 = arith.constant 0 : index
    %c0_54 = arith.constant 0 : index
    %112 = vector.load %arg8[%c0_53, %c0_54] : memref<1x32xf32, #tpu.memory_space<vmem>>, vector<1x32xf32>
    %113 = vector.broadcast %112 : vector<1x32xf32> to vector<2x32xf32>
    %114 = arith.addf %111, %113 : vector<2x32xf32>
    %cst_55 = arith.constant 0.000000e+00 : f32
    %115 = vector.broadcast %cst_55 : f32 to vector<2x32xf32>
    %116 = arith.subf %115, %114 : vector<2x32xf32>
    %117 = math.exp %116 : vector<2x32xf32>
    %cst_56 = arith.constant 1.000000e+00 : f32
    %118 = vector.broadcast %cst_56 : f32 to vector<2x32xf32>
    %119 = arith.addf %118, %117 : vector<2x32xf32>
    %120 = tpu.reciprocal %119 {approx = true} : vector<2x32xf32> -> vector<2x32xf32>
    %cst_57 = arith.constant dense<0x7F800000> : vector<2x32xf32>
    %121 = vector.multi_reduction <minimumf>, %1, %cst_57 [0] : vector<4x2x32xf32> to vector<2x32xf32>
    %c0_58 = arith.constant 0 : index
    %c0_59 = arith.constant 0 : index
    %122 = vector.load %arg9[%c0_58, %c0_59] : memref<2x32xf32, #tpu.memory_space<vmem>>, vector<2x32xf32>
    tpu.vector_store %arg9[%c0_58, %c0_59], %103 {strides = array<i32>} : memref<2x32xf32, #tpu.memory_space<vmem>>, vector<2x32xf32>,
    %123 = arith.mulf %121, %120 : vector<2x32xf32>
    %c0_60 = arith.constant 0 : index
    %c0_61 = arith.constant 0 : index
    %124 = vector.load %arg10[%c0_60, %c0_61] : memref<2x32xf32, #tpu.memory_space<vmem>>, vector<2x32xf32>
    tpu.vector_store %arg10[%c0_60, %c0_61], %123 {strides = array<i32>} : memref<2x32xf32, #tpu.memory_space<vmem>>, vector<2x32xf32>,
    return
  }
  func.func @transform_0(%arg0: i32) -> (i32, i32, i32) {
    %c0_i32 = arith.constant 0 : i32
    %c0_i32_0 = arith.constant 0 : i32
    %c0_i32_1 = arith.constant 0 : i32
    return %c0_i32, %arg0, %c0_i32_0 : i32, i32, i32
  }
  func.func @transform_1(%arg0: i32) -> (i32, i32, i32) {
    %c0_i32 = arith.constant 0 : i32
    %c0_i32_0 = arith.constant 0 : i32
    %c0_i32_1 = arith.constant 0 : i32
    return %c0_i32, %arg0, %c0_i32_0 : i32, i32, i32
  }
  func.func @transform_2(%arg0: i32) -> (i32, i32) {
    %c0_i32 = arith.constant 0 : i32
    %c0_i32_0 = arith.constant 0 : i32
    %c0_i32_1 = arith.constant 0 : i32
    return %c0_i32, %c0_i32_0 : i32, i32
  }
  func.func @transform_3(%arg0: i32) -> (i32, i32) {
    %c0_i32 = arith.constant 0 : i32
    %c0_i32_0 = arith.constant 0 : i32
    %c0_i32_1 = arith.constant 0 : i32
    return %c0_i32, %c0_i32_0 : i32, i32
  }
  func.func @transform_4(%arg0: i32) -> (i32, i32) {
    %c0_i32 = arith.constant 0 : i32
    %c0_i32_0 = arith.constant 0 : i32
    %c0_i32_1 = arith.constant 0 : i32
    return %c0_i32, %c0_i32_0 : i32, i32
  }
  func.func @transform_5(%arg0: i32) -> (i32, i32) {
    %c0_i32 = arith.constant 0 : i32
    %c0_i32_0 = arith.constant 0 : i32
    %c0_i32_1 = arith.constant 0 : i32
    return %c0_i32, %c0_i32_0 : i32, i32
  }
  func.func @transform_6(%arg0: i32) -> (i32, i32) {
    %c0_i32 = arith.constant 0 : i32
    %c0_i32_0 = arith.constant 0 : i32
    %c0_i32_1 = arith.constant 0 : i32
    return %c0_i32, %c0_i32_0 : i32, i32
  }
  func.func @transform_7(%arg0: i32) -> (i32, i32) {
    %c0_i32 = arith.constant 0 : i32
    %c0_i32_0 = arith.constant 0 : i32
    %c0_i32_1 = arith.constant 0 : i32
    return %c0_i32, %c0_i32_0 : i32, i32
  }
  func.func @transform_8(%arg0: i32) -> (i32, i32) {
    %c0_i32 = arith.constant 0 : i32
    %c0_i32_0 = arith.constant 0 : i32
    return %arg0, %c0_i32 : i32, i32
  }
  func.func @transform_9(%arg0: i32) -> (i32, i32) {
    %c0_i32 = arith.constant 0 : i32
    %c0_i32_0 = arith.constant 0 : i32
    return %arg0, %c0_i32 : i32, i32
  }
}

</mosaic_0001>

<llo_original>
// kernel: _cone_intersection_impl.1
$region0: #{_cone_intersection_impl.1}
  #allocation0 [shape = 'u32[]', space=smem, size = 0x4, offset = 0x4, fixed_abs, tag = 'smem constant byte address 0x4 - core index']
  #allocation1 [shape = 'u32[144,128]{1,0:T(1,128)}', space=vmem, size = 0x12000, scoped, tag = 'internal scratch']
  #allocation2 [shape = 'bf16[8,256]{1,0:T(8,128)(2,1)}', space=vmem, size = 0x1000, scoped, tag = 'scratch operand']
  %s0 = inlined_call_operand.vmem [shape: f32[4,2,32], index: 0, kind: input, shape index: {}]
  %s1 = inlined_call_operand.vmem [shape: f32[4,2,32], index: 1, kind: input, shape index: {}]
  %s2 = inlined_call_operand.hbm [shape: bf16[256,256], index: 2, kind: input, shape index: {}]
  %s3 = inlined_call_operand.vmem [shape: f32[1,256], index: 3, kind: input, shape index: {}]
  %s4 = inlined_call_operand.vmem [shape: bf16[128,32], index: 4, kind: input, shape index: {}]
  %s5 = inlined_call_operand.vmem [shape: f32[1,32], index: 5, kind: input, shape index: {}]
  %s6 = inlined_call_operand.vmem [shape: bf16[128,32], index: 6, kind: input, shape index: {}]
  %s7 = inlined_call_operand.vmem [shape: f32[1,32], index: 7, kind: input, shape index: {}]
  %s8 = inlined_call_operand.hbm [shape: f32[2,32], index: 8, kind: output, shape index: {0}]
  %s9 = inlined_call_operand.hbm [shape: f32[2,32], index: 9, kind: output, shape index: {1}]
  %10 = xla_tuple %s8, %s9
  %s11 = sld [smem:[#allocation0]]
  $region54: #{_cone_intersection_impl.1} parent=0
    _
  %s13 = ssub.s32 1, %s11
  %s14 = scalar_select 0, %s13, %s11
  $region1: #{_cone_intersection_impl.1} parent=0
    #allocation3 [shape = 'u8[131072]{0}', space=vmem, size = 0x20000, scoped, tag = 'input window, operand 2, single buffered']
    #allocation4 [shape = 's32[1]{0}', space=sflag, size = 0x4, scoped, tag = 'scoped memory for _cone_intersection_impl.1']
    #allocation5 [shape = 's32[1]{0}', space=sflag, size = 0x4, scoped, tag = 'scoped memory for _cone_intersection_impl.1']
    #allocation6 [shape = 'u8[1024]{0}', space=vmem, size = 0x400, scoped, tag = 'output window, operand 0, single buffered']
    #allocation7 [shape = 'u8[1024]{0}', space=vmem, size = 0x400, scoped, tag = 'output window, operand 1, single buffered']
    #allocation8 [shape = 's32[1]{0}', space=sflag, size = 0x4, scoped, tag = 'scoped memory for _cone_intersection_impl.1']
    %15 = vsyncpa [#allocation4], 0
    %16 = vsyncpa [#allocation5], 0
    %17 = vsyncpa [#allocation8], 0
    // Predicated region
    $region2: #{_cone_intersection_impl.1} parent=1 // pred_check
      _
    $region3: #{_cone_intersection_impl.1} parent=1 // pred_check_branch
      %19 = sbr.rel (0) target = $region5
    $region4: #{_cone_intersection_impl.1} parent=1 // pred_region
      _
    $region5: #{_cone_intersection_impl.1} parent=1 // pred_fallthru
      _
    // Predicated region
    $region6: #{_cone_intersection_impl.1} parent=1 // pred_check
      _
    $region7: #{_cone_intersection_impl.1} parent=1 // pred_check_branch
      %21 = sbr.rel (0) target = $region9
    $region8: #{_cone_intersection_impl.1} parent=1 // pred_region
      _
    $region9: #{_cone_intersection_impl.1} parent=1 // pred_fallthru
      _
    // Predicated region
    $region10: #{_cone_intersection_impl.1} parent=1 // pred_check
      _
    $region11: #{_cone_intersection_impl.1} parent=1 // pred_check_branch
      %23 = sbr.rel (0) target = $region13
    $region12: #{_cone_intersection_impl.1} parent=1 // pred_region
      %s25 = ssub.s32 4096, 4096
      %26 = vsyncadd [#allocation4], %s25
      %s27 = sshll.u32 [#allocation3], 4
      %s28 = int_to_ptr.vmem [resolvable:$true] %s27
      %33 = dma.hbm_to_vmem [thread:$0]  %s2, 4096, %s28, [#allocation4], 128, 128, 8
    $region13: #{_cone_intersection_impl.1} parent=1 // pred_fallthru
      _
    // Predicated region
    $region14: #{_cone_intersection_impl.1} parent=1 // pred_check
      _
    $region15: #{_cone_intersection_impl.1} parent=1 // pred_check_branch
      %35 = sbr.rel (0) target = $region17
    $region16: #{_cone_intersection_impl.1} parent=1 // pred_region
      _
    $region17: #{_cone_intersection_impl.1} parent=1 // pred_fallthru
      _
    // Predicated region
    $region18: #{_cone_intersection_impl.1} parent=1 // pred_check
      _
    $region19: #{_cone_intersection_impl.1} parent=1 // pred_check_branch
      %37 = sbr.rel (0) target = $region21
    $region20: #{_cone_intersection_impl.1} parent=1 // pred_region
      _
    $region21: #{_cone_intersection_impl.1} parent=1 // pred_fallthru
      _
    // Predicated region
    $region22: #{_cone_intersection_impl.1} parent=1 // pred_check
      _
    $region23: #{_cone_intersection_impl.1} parent=1 // pred_check_branch
      %39 = sbr.rel (0) target = $region25
    $region24: #{_cone_intersection_impl.1} parent=1 // pred_region
      _
    $region25: #{_cone_intersection_impl.1} parent=1 // pred_fallthru
      _
    // Predicated region
    $region26: #{_cone_intersection_impl.1} parent=1 // pred_check
      _
    $region27: #{_cone_intersection_impl.1} parent=1 // pred_check_branch
      %41 = sbr.rel (0) target = $region29
    $region28: #{_cone_intersection_impl.1} parent=1 // pred_region
      _
    $region29: #{_cone_intersection_impl.1} parent=1 // pred_fallthru
      _
    // Predicated region
    $region30: #{_cone_intersection_impl.1} parent=1 // pred_check
      _
    $region31: #{_cone_intersection_impl.1} parent=1 // pred_check_branch
      %43 = sbr.rel (0) target = $region33
    $region32: #{_cone_intersection_impl.1} parent=1 // pred_region
      _
    $region33: #{_cone_intersection_impl.1} parent=1 // pred_fallthru
      _
    // Predicated region
    $region34: #{_cone_intersection_impl.1} parent=1 // pred_check
      _
    $region35: #{_cone_intersection_impl.1} parent=1 // pred_check_branch
      %45 = sbr.rel (0) target = $region37
    $region36: #{_cone_intersection_impl.1} parent=1 // pred_region
      %46 = dma.done [#allocation4], 4096
    $region37: #{_cone_intersection_impl.1} parent=1 // pred_fallthru
      _
    %v48 = vld [vmem:[%s0] sm:$0x3]
    %v49 = vld [vmem:[%s0 + $0x2] sm:$0x3]
    %v50 = vld [vmem:[%s0 + $0x4] sm:$0x3]
    %v51 = vld [vmem:[%s0 + $0x6] sm:$0x3]
    %v52 = vld [vmem:[%s1] sm:$0x3]
    %v53 = vld [vmem:[%s1 + $0x2] sm:$0x3]
    %v54 = vld [vmem:[%s1 + $0x4] sm:$0x3]
    %v55 = vld [vmem:[%s1 + $0x6] sm:$0x3]
    %v56 = vsub.f32 %v48, %v52
    %v57 = vsub.f32 %v49, %v53
    %v58 = vsub.f32 %v50, %v54
    %v59 = vsub.f32 %v51, %v55
    %v60 = vadd.f32 %v48, %v52
    %v61 = vadd.f32 %v49, %v53
    %v62 = vadd.f32 %v50, %v54
    %v63 = vadd.f32 %v51, %v55
    %64 = vst [vmem:[#allocation2] sm:$0xff] 0
    %v69 = vcombine.low %v56, %v57
    %v70 = vcombine.low %v58, %v59
    %v72 = vunpack.c.l.s4 1983009808
    %v73 = vunpack.c.0.s8 %v72
    %v74 = vlaneseq
    %v75 = vshrl.u32 %v74, 7
    %v76 = vsub.s32 %v73, %v75
    %v77 = vrot.slane %v69, %v76
    %v79 = vunpack.c.l.s4 1983009808
    %v80 = vunpack.c.0.s8 %v79
    %v81 = vlaneseq
    %v82 = vshrl.u32 %v81, 7
    %v83 = vsub.s32 %v80, %v82
    %v84 = vrot.slane %v70, %v83
    %v85 = vcombine.low %v77, %v84
    %v87 = vpack.c.bf16 %v85, %v85
    %vm88 = vcmask 257024
    %89 = vst.msk [vmem:[#allocation2] sm:$0xf] %vm88, %v87
    %v94 = vcombine.low %v60, %v61
    %v95 = vcombine.low %v62, %v63
    %v97 = vunpack.c.l.s4 1983009808
    %v98 = vunpack.c.0.s8 %v97
    %v99 = vlaneseq
    %v100 = vshrl.u32 %v99, 7
    %v101 = vsub.s32 %v98, %v100
    %v102 = vrot.slane %v94, %v101
    %v104 = vunpack.c.l.s4 1983009808
    %v105 = vunpack.c.0.s8 %v104
    %v106 = vlaneseq
    %v107 = vshrl.u32 %v106, 7
    %v108 = vsub.s32 %v105, %v107
    %v109 = vrot.slane %v95, %v108
    %v110 = vcombine.low %v102, %v109
    %v112 = vpack.c.bf16 %v110, %v110
    %113 = vst.msk [vmem:[#allocation2 + $0x4] sm:$0xf] %vm88, %v112
    %v114 = vld [vmem:[#allocation2] sm:$0xff]
    %v115 = vld [vmem:[#allocation3] sm:$0xff]
    %v116 = vld [vmem:[#allocation3 + $0x8] sm:$0xff]
    %v117 = vld [vmem:[#allocation3 + $0x10] sm:$0xff]
    %v118 = vld [vmem:[#allocation3 + $0x18] sm:$0xff]
    %v119 = vld [vmem:[#allocation3 + $0x20] sm:$0xff]
    %v120 = vld [vmem:[#allocation3 + $0x28] sm:$0xff]
    %v121 = vld [vmem:[#allocation3 + $0x30] sm:$0xff]
    %v122 = vld [vmem:[#allocation3 + $0x38] sm:$0xff]
    %v123 = vld [vmem:[#allocation3 + $0x40] sm:$0xff]
    %v124 = vld [vmem:[#allocation3 + $0x48] sm:$0xff]
    %v125 = vld [vmem:[#allocation3 + $0x50] sm:$0xff]
    %v126 = vld [vmem:[#allocation3 + $0x58] sm:$0xff]
    %v127 = vld [vmem:[#allocation3 + $0x60] sm:$0xff]
    %v128 = vld [vmem:[#allocation3 + $0x68] sm:$0xff]
    %v129 = vld [vmem:[#allocation3 + $0x70] sm:$0xff]
    %v130 = vld [vmem:[#allocation3 + $0x78] sm:$0xff]
    %v131 = vld [vmem:[#allocation3 + $0x80] sm:$0xff]
    %v132 = vld [vmem:[#allocation3 + $0x88] sm:$0xff]
    %v133 = vld [vmem:[#allocation3 + $0x90] sm:$0xff]
    %v134 = vld [vmem:[#allocation3 + $0x98] sm:$0xff]
    %v135 = vld [vmem:[#allocation3 + $0xa0] sm:$0xff]
    %v136 = vld [vmem:[#allocation3 + $0xa8] sm:$0xff]
    %v137 = vld [vmem:[#allocation3 + $0xb0] sm:$0xff]
    %v138 = vld [vmem:[#allocation3 + $0xb8] sm:$0xff]
    %v139 = vld [vmem:[#allocation3 + $0xc0] sm:$0xff]
    %v140 = vld [vmem:[#allocation3 + $0xc8] sm:$0xff]
    %v141 = vld [vmem:[#allocation3 + $0xd0] sm:$0xff]
    %v142 = vld [vmem:[#allocation3 + $0xd8] sm:$0xff]
    %v143 = vld [vmem:[#allocation3 + $0xe0] sm:$0xff]
    %v144 = vld [vmem:[#allocation3 + $0xe8] sm:$0xff]
    %v145 = vld [vmem:[#allocation3 + $0xf0] sm:$0xff]
    %v146 = vld [vmem:[#allocation3 + $0xf8] sm:$0xff]
    %v147 = vld [vmem:[%s3] sm:$0x3]
    %v149 = vlaneseq
    %v150 = vshrl.u32 %v149, 7
    %v151 = vsub.s32 0, %v150
    %v152 = vrot.slane %v147, %v151
    %v153 = vlaneseq
    %v154 = vshrl.u32 %v153, 7
    %v155 = vsub.s32 1, %v154
    %v156 = vrot.slane %v147, %v155
    %v160 = vunpack.c.l.b16 %v114
    %v161 = vunpack.c.h.b16 %v114
    %v162 = vpack.c.b16 %v160, %v160
    %v163 = vpack.c.b16 %v161, %v161
    %v198 = vunpack.c.l.b16 %v115
    %v199 = vunpack.c.h.b16 %v115
    %v200 = vunpack.c.l.b16 %v116
    %v201 = vunpack.c.h.b16 %v116
    %v202 = vunpack.c.l.b16 %v117
    %v203 = vunpack.c.h.b16 %v117
    %v204 = vunpack.c.l.b16 %v118
    %v205 = vunpack.c.h.b16 %v118
    %v206 = vunpack.c.l.b16 %v119
    %v207 = vunpack.c.h.b16 %v119
    %v208 = vunpack.c.l.b16 %v120
    %v209 = vunpack.c.h.b16 %v120
    %v210 = vunpack.c.l.b16 %v121
    %v211 = vunpack.c.h.b16 %v121
    %v212 = vunpack.c.l.b16 %v122
    %v213 = vunpack.c.h.b16 %v122
    %v214 = vunpack.c.l.b16 %v123
    %v215 = vunpack.c.h.b16 %v123
    %v216 = vunpack.c.l.b16 %v124
    %v217 = vunpack.c.h.b16 %v124
    %v218 = vunpack.c.l.b16 %v125
    %v219 = vunpack.c.h.b16 %v125
    %v220 = vunpack.c.l.b16 %v126
    %v221 = vunpack.c.h.b16 %v126
    %v222 = vunpack.c.l.b16 %v127
    %v223 = vunpack.c.h.b16 %v127
    %v224 = vunpack.c.l.b16 %v128
    %v225 = vunpack.c.h.b16 %v128
    %v226 = vunpack.c.l.b16 %v129
    %v227 = vunpack.c.h.b16 %v129
    %v228 = vunpack.c.l.b16 %v130
    %v229 = vunpack.c.h.b16 %v130
    %v230 = vunpack.c.l.b16 %v131
    %v231 = vunpack.c.h.b16 %v131
    %v232 = vunpack.c.l.b16 %v132
    %v233 = vunpack.c.h.b16 %v132
    %v234 = vunpack.c.l.b16 %v133
    %v235 = vunpack.c.h.b16 %v133
    %v236 = vunpack.c.l.b16 %v134
    %v237 = vunpack.c.h.b16 %v134
    %v238 = vunpack.c.l.b16 %v135
    %v239 = vunpack.c.h.b16 %v135
    %v240 = vunpack.c.l.b16 %v136
    %v241 = vunpack.c.h.b16 %v136
    %v242 = vunpack.c.l.b16 %v137
    %v243 = vunpack.c.h.b16 %v137
    %v244 = vunpack.c.l.b16 %v138
    %v245 = vunpack.c.h.b16 %v138
    %v246 = vunpack.c.l.b16 %v139
    %v247 = vunpack.c.h.b16 %v139
    %v248 = vunpack.c.l.b16 %v140
    %v249 = vunpack.c.h.b16 %v140
    %v250 = vunpack.c.l.b16 %v141
    %v251 = vunpack.c.h.b16 %v141
    %v252 = vunpack.c.l.b16 %v142
    %v253 = vunpack.c.h.b16 %v142
    %v254 = vunpack.c.l.b16 %v143
    %v255 = vunpack.c.h.b16 %v143
    %v256 = vunpack.c.l.b16 %v144
    %v257 = vunpack.c.h.b16 %v144
    %v258 = vunpack.c.l.b16 %v145
    %v259 = vunpack.c.h.b16 %v145
    %v260 = vunpack.c.l.b16 %v146
    %v261 = vunpack.c.h.b16 %v146
    %v262 = vpack.c.b16 %v200, %v198
    %v263 = vpack.c.b16 %v201, %v199
    %v264 = vpack.c.b16 %v204, %v202
    %v265 = vpack.c.b16 %v205, %v203
    %v266 = vpack.c.b16 %v208, %v206
    %v267 = vpack.c.b16 %v209, %v207
    %v268 = vpack.c.b16 %v212, %v210
    %v269 = vpack.c.b16 %v213, %v211
    %v270 = vpack.c.b16 %v216, %v214
    %v271 = vpack.c.b16 %v217, %v215
    %v272 = vpack.c.b16 %v220, %v218
    %v273 = vpack.c.b16 %v221, %v219
    %v274 = vpack.c.b16 %v224, %v222
    %v275 = vpack.c.b16 %v225, %v223
    %v276 = vpack.c.b16 %v228, %v226
    %v277 = vpack.c.b16 %v229, %v227
    %v278 = vpack.c.b16 %v232, %v230
    %v279 = vpack.c.b16 %v233, %v231
    %v280 = vpack.c.b16 %v236, %v234
    %v281 = vpack.c.b16 %v237, %v235
    %v282 = vpack.c.b16 %v240, %v238
    %v283 = vpack.c.b16 %v241, %v239
    %v284 = vpack.c.b16 %v244, %v242
    %v285 = vpack.c.b16 %v245, %v243
    %v286 = vpack.c.b16 %v248, %v246
    %v287 = vpack.c.b16 %v249, %v247
    %v288 = vpack.c.b16 %v252, %v250
    %v289 = vpack.c.b16 %v253, %v251
    %v290 = vpack.c.b16 %v256, %v254
    %v291 = vpack.c.b16 %v257, %v255
    %v292 = vpack.c.b16 %v260, %v258
    %v293 = vpack.c.b16 %v261, %v259
    %326 = vmatprep.subr.bf16.mxu0 %v277
    %327 = vmatpush1.bf16.msra.mxu0 %v276
    %328 = vmatprep.subr.bf16.mxu0 %v275
    %329 = vmatpush1.bf16.msra.mxu0 %v274
    %330 = vmatprep.subr.bf16.mxu0 %v273
    %331 = vmatpush1.bf16.msra.mxu0 %v272
    %332 = vmatprep.subr.bf16.mxu0 %v271
    %333 = vmatpush1.bf16.msra.mxu0 %v270
    %334 = vmatprep.subr.bf16.mxu0 %v269
    %335 = vmatpush1.bf16.msra.mxu0 %v268
    %336 = vmatprep.subr.bf16.mxu0 %v267
    %337 = vmatpush1.bf16.msra.mxu0 %v266
    %338 = vmatprep.subr.bf16.mxu0 %v265
    %339 = vmatpush1.bf16.msra.mxu0 %v264
    %340 = vmatprep.subr.bf16.mxu0 %v263
    %341 = vmatpush1.bf16.msra.mxu0 %v262
    %342 = vmatprep.subr.bf16.mxu0 %v293
    %343 = vmatpush2.bf16.msra.mxu0 %v292
    %344 = vmatprep.subr.bf16.mxu0 %v291
    %345 = vmatpush2.bf16.msra.mxu0 %v290
    %346 = vmatprep.subr.bf16.mxu0 %v289
    %347 = vmatpush2.bf16.msra.mxu0 %v288
    %348 = vmatprep.subr.bf16.mxu0 %v287
    %349 = vmatpush2.bf16.msra.mxu0 %v286
    %350 = vmatprep.subr.bf16.mxu0 %v285
    %351 = vmatpush2.bf16.msra.mxu0 %v284
    %352 = vmatprep.subr.bf16.mxu0 %v283
    %353 = vmatpush2.bf16.msra.mxu0 %v282
    %354 = vmatprep.subr.bf16.mxu0 %v281
    %355 = vmatpush2.bf16.msra.mxu0 %v280
    %356 = vmatprep.subr.bf16.mxu0 %v279
    %357 = vmatpush2.bf16.msra.mxu0 %v278
    %358 = vmatprep.mubr.bf16.mxu0 %v163
    %359 = vmatmul.mubr.bf16.gmra.mxu0 %v162
    %v360 = vpop.f32.mrf.mxu0
    %v361 = vadd.f32 %v152, %v360
    %v362 = vpop.f32.mrf.mxu0
    %v363 = vadd.f32 %v156, %v362
    %v364 = vpop.f32.mrf.mxu0
    %v365 = vpop.f32.mrf.mxu0
    %366 = vdwg.mxu0
    %v367 = vmax.f32 %v361, 0.0
    %v368 = vmax.f32 %v363, 0.0
    %v369 = vpack.c.bf16 %v367, %v367
    %v370 = vpack.c.bf16 %v368, %v368
    %v371 = vld [vmem:[%s4] sm:$0xf]
    %v372 = vld [vmem:[%s4 + $0x4] sm:$0xf]
    %v373 = vld [vmem:[%s4 + $0x8] sm:$0xf]
    %v374 = vld [vmem:[%s4 + $0xc] sm:$0xf]
    %v375 = vld [vmem:[%s4 + $0x10] sm:$0xf]
    %v376 = vld [vmem:[%s4 + $0x14] sm:$0xf]
    %v377 = vld [vmem:[%s4 + $0x18] sm:$0xf]
    %v378 = vld [vmem:[%s4 + $0x1c] sm:$0xf]
    %v379 = vld [vmem:[%s4 + $0x20] sm:$0xf]
    %v380 = vld [vmem:[%s4 + $0x24] sm:$0xf]
    %v381 = vld [vmem:[%s4 + $0x28] sm:$0xf]
    %v382 = vld [vmem:[%s4 + $0x2c] sm:$0xf]
    %v383 = vld [vmem:[%s4 + $0x30] sm:$0xf]
    %v384 = vld [vmem:[%s4 + $0x34] sm:$0xf]
    %v385 = vld [vmem:[%s4 + $0x38] sm:$0xf]
    %v386 = vld [vmem:[%s4 + $0x3c] sm:$0xf]
    %v387 = vld [vmem:[%s5] sm:$0x1]
    %v389 = vlaneseq
    %v390 = vshrl.u32 %v389, 7
    %v391 = vsub.s32 0, %v390
    %v392 = vrot.slane %v387, %v391
    %v410 = vunpack.c.l.b16 %v371
    %v411 = vunpack.c.l.b16 %v372
    %v412 = vunpack.c.l.b16 %v373
    %v413 = vunpack.c.l.b16 %v374
    %v414 = vunpack.c.l.b16 %v375
    %v415 = vunpack.c.l.b16 %v376
    %v416 = vunpack.c.l.b16 %v377
    %v417 = vunpack.c.l.b16 %v378
    %v418 = vunpack.c.l.b16 %v379
    %v419 = vunpack.c.l.b16 %v380
    %v420 = vunpack.c.l.b16 %v381
    %v421 = vunpack.c.l.b16 %v382
    %v422 = vunpack.c.l.b16 %v383
    %v423 = vunpack.c.l.b16 %v384
    %v424 = vunpack.c.l.b16 %v385
    %v425 = vunpack.c.l.b16 %v386
    %v426 = vpack.c.b16 %v411, %v410
    %v427 = vpack.c.b16 %v413, %v412
    %v428 = vpack.c.b16 %v415, %v414
    %v429 = vpack.c.b16 %v417, %v416
    %v430 = vpack.c.b16 %v419, %v418
    %v431 = vpack.c.b16 %v421, %v420
    %v432 = vpack.c.b16 %v423, %v422
    %v433 = vpack.c.b16 %v425, %v424
    %442 = vmatprep.subr.bf16.mxu0 0
    %443 = vmatpush1.bf16.msra.mxu0 %v433
    %444 = vmatprep.subr.bf16.mxu0 0
    %445 = vmatpush1.bf16.msra.mxu0 %v432
    %446 = vmatprep.subr.bf16.mxu0 0
    %447 = vmatpush1.bf16.msra.mxu0 %v431
    %448 = vmatprep.subr.bf16.mxu0 0
    %449 = vmatpush1.bf16.msra.mxu0 %v430
    %450 = vmatprep.subr.bf16.mxu0 0
    %451 = vmatpush1.bf16.msra.mxu0 %v429
    %452 = vmatprep.subr.bf16.mxu0 0
    %453 = vmatpush1.bf16.msra.mxu0 %v428
    %454 = vmatprep.subr.bf16.mxu0 0
    %455 = vmatpush1.bf16.msra.mxu0 %v427
    %456 = vmatprep.subr.bf16.mxu0 0
    %457 = vmatpush1.bf16.msra.mxu0 %v426
    %458 = vmatprep.subr.bf16.mxu0 0
    %459 = vmatpush2.bf16.msra.mxu0 0
    %460 = vmatprep.subr.bf16.mxu0 0
    %461 = vmatpush2.bf16.msra.mxu0 0
    %462 = vmatprep.subr.bf16.mxu0 0
    %463 = vmatpush2.bf16.msra.mxu0 0
    %464 = vmatprep.subr.bf16.mxu0 0
    %465 = vmatpush2.bf16.msra.mxu0 0
    %466 = vmatprep.subr.bf16.mxu0 0
    %467 = vmatpush2.bf16.msra.mxu0 0
    %468 = vmatprep.subr.bf16.mxu0 0
    %469 = vmatpush2.bf16.msra.mxu0 0
    %470 = vmatprep.subr.bf16.mxu0 0
    %471 = vmatpush2.bf16.msra.mxu0 0
    %472 = vmatprep.subr.bf16.mxu0 0
    %473 = vmatpush2.bf16.msra.mxu0 0
    %474 = vmatprep.mubr.bf16.mxu0 0
    %475 = vmatmul.mubr.bf16.gmra.mxu0 %v369
    %v476 = vpop.f32.mrf.mxu0
    %v477 = vadd.f32 %v392, %v476
    %v478 = vpop.f32.mrf.mxu0
    %v479 = vpop.f32.mrf.mxu0
    %v480 = vpop.f32.mrf.mxu0
    %481 = vdwg.mxu0
    %v483 = vcombine.high %v477, %v477
    %v485 = vunpack.c.l.s4 1983009808
    %v486 = vunpack.c.0.s8 %v485
    %v487 = vlaneseq
    %v488 = vshrl.u32 %v487, 7
    %v489 = vsub.s32 %v486, %v488
    %v490 = vrot.slane %v477, %v489
    %v492 = vunpack.c.l.s4 1983009808
    %v493 = vunpack.c.0.s8 %v492
    %v494 = vlaneseq
    %v495 = vshrl.u32 %v494, 7
    %v496 = vsub.s32 %v493, %v495
    %v497 = vrot.slane %v483, %v496
    %v498 = vcombine.high %v490, %v490
    %v499 = vcombine.high %v497, %v497
    %vm504 = vcmask 254976
    %v505 = vsel %vm504, %v490, -inf
    %v506 = vsel %vm504, %v498, -inf
    %v507 = vsel %vm504, %v497, -inf
    %v508 = vsel %vm504, %v499, -inf
    %v509 = vmax.f32 %v505, %v506
    %v510 = vmax.f32 %v507, %v508
    %v511 = vmax.f32 %v509, %v510
    %v512 = vsub.f32 %v490, %v511
    %v513 = vsub.f32 %v498, %v511
    %v514 = vsub.f32 %v497, %v511
    %v515 = vsub.f32 %v499, %v511
    %v516 = vmul.f32 %v512, 1.442695
    %v517 = vpow.pop %v516
    %v518 = vmul.f32 %v513, 1.442695
    %v519 = vpow.pop %v518
    %v520 = vmul.f32 %v514, 1.442695
    %v521 = vpow.pop %v520
    %v522 = vmul.f32 %v515, 1.442695
    %v523 = vpow.pop %v522
    %v524 = vsel %vm504, %v517, 0.0
    %v525 = vsel %vm504, %v519, 0.0
    %v526 = vadd.f32 %v524, %v525
    %v527 = vsel %vm504, %v521, 0.0
    %v528 = vadd.f32 %v526, %v527
    %v529 = vsel %vm504, %v523, 0.0
    %v530 = vadd.f32 %v528, %v529
    %v531 = vand.u32 2147483647, %v48
    %vm532 = vcmp.le.f32.partialorder %v531, 0.7853982
    %vm533 = vcmp.lt.s32.totalorder %v48, 0
    %v534 = vand.u32 %v48, 2139095040
    %v535 = vshrl.u32 %v534, 23
    %v536 = vsub.s32 %v535, 127
    %v537 = vand.u32 2147483647, %v48
    %v538 = vand.u32 %v537, 8388607
    %v539 = vor.u32 %v538, 8388608
    %v540 = vsub.s32 0, %v539
    %v541 = vadd.s32 %v536, 1
    %vm542 = vcmp.gt.s32.totalorder %v541, 0
    %v543 = vsel %vm542, %v541, 0
    %v544 = vshrl.u32 %v543, 5
    %v545 = vand.u32 %v543, 31
    %v546 = vsub.s32 32, %v545
    %v547 = vshrl.u32 683565275, %v546
    %v548 = vshll.u32 683565275, %v545
    %v549 = vshrl.u32 2475754826, %v546
    %v550 = vor.u32 %v548, %v549
    %v551 = vshll.u32 2475754826, %v545
    %v552 = vshrl.u32 2131351028, %v546
    %v553 = vor.u32 %v551, %v552
    %v554 = vshll.u32 2131351028, %v545
    %v555 = vshrl.u32 2102212464, %v546
    %v556 = vor.u32 %v554, %v555
    %v557 = vshll.u32 2102212464, %v545
    %v558 = vshrl.u32 920167782, %v546
    %v559 = vor.u32 %v557, %v558
    %v560 = vshll.u32 920167782, %v545
    %v561 = vshrl.u32 1326507024, %v546
    %v562 = vor.u32 %v560, %v561
    %vm563 = vcmp.lt.s32.totalorder %v544, 1
    %vm564 = vcmp.lt.s32.totalorder %v544, 2
    %vm565 = vcmp.lt.s32.totalorder %v544, 3
    %vm566 = vcmp.lt.s32.totalorder %v544, 4
    %v567 = vsel %vm563, %v547, %v550
    %v568 = vsel %vm566, %v556, 2102212464
    %v569 = vsel %vm565, %v553, %v568
    %v570 = vsel %vm564, %v567, %v569
    %v571 = vsel %vm563, %v550, %v553
    %v572 = vsel %vm566, %v559, 920167782
    %v573 = vsel %vm565, %v556, %v572
    %v574 = vsel %vm564, %v571, %v573
    %v575 = vsel %vm563, %v553, %v556
    %v576 = vsel %vm566, %v562, 1326507024
    %v577 = vsel %vm565, %v559, %v576
    %v578 = vsel %vm564, %v575, %v577
    %v579 = vshll.u32 %v539, 8
    %v580 = vmul.u32.u64.compose %v579, %v578
    %v581 = vextract.low.u32 %v580
    %v582 = vextract.high.u32 %v580
    %v583 = vmul.u32.u64.compose %v579, %v574
    %v584 = vextract.low.u32 %v583
    %v585 = vextract.high.u32 %v583
    %v586 = vmul.u32 %v579, %v570
    %v587 = vadd.s32 %v582, %v584
    %vm588 = vc.u32 %v582, %v584
    %v589 = vadd.s32 %v585, 1
    %v590 = vsel %vm588, %v589, %v585
    %v591 = vadd.s32 %v586, %v590
    %v592 = vadd.s32 %v591, 536870912
    %v593 = vshrl.u32 %v592, 30
    %v594 = vshll.u32 %v593, 30
    %v595 = vsub.s32 %v591, %v594
    %vm596 = vcmp.lt.s32.totalorder %v595, 0
    %v597 = vsub.s32 0, %v595
    %v598 = vsel %vm596, %v597, %v595
    %v599 = vclz %v598
    %v600 = vsub.s32 %v599, 2
    %vm601 = vcmp.gt.s32.totalorder 0, %v600
    %v602 = vsel %vm601, 0, %v600
    %v603 = vsub.s32 32, %v602
    %v604 = vshll.u32 %v595, %v602
    %v605 = vshrl.u32 %v587, %v603
    %v606 = vor.u32 %v604, %v605
    %v607 = vsub.s32 4294967266, %v602
    %v608 = vadd.s32 %v607, 127
    %v609 = vshll.u32 %v608, 23
    %v610 = vor.u32 4788187, %v609
    %v611 = vand.u32 2147483647, %v610
    %v613 = vcvt.s32.f32 %v606
    %v614 = vmul.f32 %v613, %v611
    %v615 = vxor.u32 %v614, 2147483648
    %v616 = vsel %vm533, %v615, %v614
    %v617 = vsub.s32 4, %v593
    %v618 = vsel %vm533, %v617, %v593
    %v619 = vsel %vm532, %v48, %v616
    %v620 = vsel %vm532, 0, %v618
    %v621 = vcosq.f32.pop %v619
    %v622 = vsinq.f32.pop %v619
    %vm623 = vweird.f32 %v48
    %v624 = vand.u32 %v620, 3
    %vm625 = vcmp.lt.s32.totalorder %v624, 2
    %vm626 = vcmp.eq.s32.totalorder %v624, 0
    %v627 = vxor.u32 %v622, 2147483648
    %v628 = vsel %vm626, %v621, %v627
    %vm629 = vcmp.eq.s32.totalorder %v624, 2
    %v630 = vxor.u32 %v621, 2147483648
    %v631 = vsel %vm629, %v630, %v622
    %v632 = vsel %vm625, %v628, %v631
    %v633 = vsel %vm623, nan, %v632
    %v634 = vand.u32 2147483647, %v49
    %vm635 = vcmp.le.f32.partialorder %v634, 0.7853982
    %vm636 = vcmp.lt.s32.totalorder %v49, 0
    %v637 = vand.u32 %v49, 2139095040
    %v638 = vshrl.u32 %v637, 23
    %v639 = vsub.s32 %v638, 127
    %v640 = vand.u32 2147483647, %v49
    %v641 = vand.u32 %v640, 8388607
    %v642 = vor.u32 %v641, 8388608
    %v643 = vsub.s32 0, %v642
    %v644 = vadd.s32 %v639, 1
    %vm645 = vcmp.gt.s32.totalorder %v644, 0
    %v646 = vsel %vm645, %v644, 0
    %v647 = vshrl.u32 %v646, 5
    %v648 = vand.u32 %v646, 31
    %v649 = vsub.s32 32, %v648
    %v650 = vshrl.u32 683565275, %v649
    %v651 = vshll.u32 683565275, %v648
    %v652 = vshrl.u32 2475754826, %v649
    %v653 = vor.u32 %v651, %v652
    %v654 = vshll.u32 2475754826, %v648
    %v655 = vshrl.u32 2131351028, %v649
    %v656 = vor.u32 %v654, %v655
    %v657 = vshll.u32 2131351028, %v648
    %v658 = vshrl.u32 2102212464, %v649
    %v659 = vor.u32 %v657, %v658
    %v660 = vshll.u32 2102212464, %v648
    %v661 = vshrl.u32 920167782, %v649
    %v662 = vor.u32 %v660, %v661
    %v663 = vshll.u32 920167782, %v648
    %v664 = vshrl.u32 1326507024, %v649
    %v665 = vor.u32 %v663, %v664
    %vm666 = vcmp.lt.s32.totalorder %v647, 1
    %vm667 = vcmp.lt.s32.totalorder %v647, 2
    %vm668 = vcmp.lt.s32.totalorder %v647, 3
    %vm669 = vcmp.lt.s32.totalorder %v647, 4
    %v670 = vsel %vm666, %v650, %v653
    %v671 = vsel %vm669, %v659, 2102212464
    %v672 = vsel %vm668, %v656, %v671
    %v673 = vsel %vm667, %v670, %v672
    %v674 = vsel %vm666, %v653, %v656
    %v675 = vsel %vm669, %v662, 920167782
    %v676 = vsel %vm668, %v659, %v675
    %v677 = vsel %vm667, %v674, %v676
    %v678 = vsel %vm666, %v656, %v659
    %v679 = vsel %vm669, %v665, 1326507024
    %v680 = vsel %vm668, %v662, %v679
    %v681 = vsel %vm667, %v678, %v680
    %v682 = vshll.u32 %v642, 8
    %v683 = vmul.u32.u64.compose %v682, %v681
    %v684 = vextract.low.u32 %v683
    %v685 = vextract.high.u32 %v683
    %v686 = vmul.u32.u64.compose %v682, %v677
    %v687 = vextract.low.u32 %v686
    %v688 = vextract.high.u32 %v686
    %v689 = vmul.u32 %v682, %v673
    %v690 = vadd.s32 %v685, %v687
    %vm691 = vc.u32 %v685, %v687
    %v692 = vadd.s32 %v688, 1
    %v693 = vsel %vm691, %v692, %v688
    %v694 = vadd.s32 %v689, %v693
    %v695 = vadd.s32 %v694, 536870912
    %v696 = vshrl.u32 %v695, 30
    %v697 = vshll.u32 %v696, 30
    %v698 = vsub.s32 %v694, %v697
    %vm699 = vcmp.lt.s32.totalorder %v698, 0
    %v700 = vsub.s32 0, %v698
    %v701 = vsel %vm699, %v700, %v698
    %v702 = vclz %v701
    %v703 = vsub.s32 %v702, 2
    %vm704 = vcmp.gt.s32.totalorder 0, %v703
    %v705 = vsel %vm704, 0, %v703
    %v706 = vsub.s32 32, %v705
    %v707 = vshll.u32 %v698, %v705
    %v708 = vshrl.u32 %v690, %v706
    %v709 = vor.u32 %v707, %v708
    %v710 = vsub.s32 4294967266, %v705
    %v711 = vadd.s32 %v710, 127
    %v712 = vshll.u32 %v711, 23
    %v713 = vor.u32 4788187, %v712
    %v714 = vand.u32 2147483647, %v713
    %v716 = vcvt.s32.f32 %v709
    %v717 = vmul.f32 %v716, %v714
    %v718 = vxor.u32 %v717, 2147483648
    %v719 = vsel %vm636, %v718, %v717
    %v720 = vsub.s32 4, %v696
    %v721 = vsel %vm636, %v720, %v696
    %v722 = vsel %vm635, %v49, %v719
    %v723 = vsel %vm635, 0, %v721
    %v724 = vcosq.f32.pop %v722
    %v725 = vsinq.f32.pop %v722
    %vm726 = vweird.f32 %v49
    %v727 = vand.u32 %v723, 3
    %vm728 = vcmp.lt.s32.totalorder %v727, 2
    %vm729 = vcmp.eq.s32.totalorder %v727, 0
    %v730 = vxor.u32 %v725, 2147483648
    %v731 = vsel %vm729, %v724, %v730
    %vm732 = vcmp.eq.s32.totalorder %v727, 2
    %v733 = vxor.u32 %v724, 2147483648
    %v734 = vsel %vm732, %v733, %v725
    %v735 = vsel %vm728, %v731, %v734
    %v736 = vsel %vm726, nan, %v735
    %v737 = vand.u32 2147483647, %v50
    %vm738 = vcmp.le.f32.partialorder %v737, 0.7853982
    %vm739 = vcmp.lt.s32.totalorder %v50, 0
    %v740 = vand.u32 %v50, 2139095040
    %v741 = vshrl.u32 %v740, 23
    %v742 = vsub.s32 %v741, 127
    %v743 = vand.u32 2147483647, %v50
    %v744 = vand.u32 %v743, 8388607
    %v745 = vor.u32 %v744, 8388608
    %v746 = vsub.s32 0, %v745
    %v747 = vadd.s32 %v742, 1
    %vm748 = vcmp.gt.s32.totalorder %v747, 0
    %v749 = vsel %vm748, %v747, 0
    %v750 = vshrl.u32 %v749, 5
    %v751 = vand.u32 %v749, 31
    %v752 = vsub.s32 32, %v751
    %v753 = vshrl.u32 683565275, %v752
    %v754 = vshll.u32 683565275, %v751
    %v755 = vshrl.u32 2475754826, %v752
    %v756 = vor.u32 %v754, %v755
    %v757 = vshll.u32 2475754826, %v751
    %v758 = vshrl.u32 2131351028, %v752
    %v759 = vor.u32 %v757, %v758
    %v760 = vshll.u32 2131351028, %v751
    %v761 = vshrl.u32 2102212464, %v752
    %v762 = vor.u32 %v760, %v761
    %v763 = vshll.u32 2102212464, %v751
    %v764 = vshrl.u32 920167782, %v752
    %v765 = vor.u32 %v763, %v764
    %v766 = vshll.u32 920167782, %v751
    %v767 = vshrl.u32 1326507024, %v752
    %v768 = vor.u32 %v766, %v767
    %vm769 = vcmp.lt.s32.totalorder %v750, 1
    %vm770 = vcmp.lt.s32.totalorder %v750, 2
    %vm771 = vcmp.lt.s32.totalorder %v750, 3
    %vm772 = vcmp.lt.s32.totalorder %v750, 4
    %v773 = vsel %vm769, %v753, %v756
    %v774 = vsel %vm772, %v762, 2102212464
    %v775 = vsel %vm771, %v759, %v774
    %v776 = vsel %vm770, %v773, %v775
    %v777 = vsel %vm769, %v756, %v759
    %v778 = vsel %vm772, %v765, 920167782
    %v779 = vsel %vm771, %v762, %v778
    %v780 = vsel %vm770, %v777, %v779
    %v781 = vsel %vm769, %v759, %v762
    %v782 = vsel %vm772, %v768, 1326507024
    %v783 = vsel %vm771, %v765, %v782
    %v784 = vsel %vm770, %v781, %v783
    %v785 = vshll.u32 %v745, 8
    %v786 = vmul.u32.u64.compose %v785, %v784
    %v787 = vextract.low.u32 %v786
    %v788 = vextract.high.u32 %v786
    %v789 = vmul.u32.u64.compose %v785, %v780
    %v790 = vextract.low.u32 %v789
    %v791 = vextract.high.u32 %v789
    %v792 = vmul.u32 %v785, %v776
    %v793 = vadd.s32 %v788, %v790
    %vm794 = vc.u32 %v788, %v790
    %v795 = vadd.s32 %v791, 1
    %v796 = vsel %vm794, %v795, %v791
    %v797 = vadd.s32 %v792, %v796
    %v798 = vadd.s32 %v797, 536870912
    %v799 = vshrl.u32 %v798, 30
    %v800 = vshll.u32 %v799, 30
    %v801 = vsub.s32 %v797, %v800
    %vm802 = vcmp.lt.s32.totalorder %v801, 0
    %v803 = vsub.s32 0, %v801
    %v804 = vsel %vm802, %v803, %v801
    %v805 = vclz %v804
    %v806 = vsub.s32 %v805, 2
    %vm807 = vcmp.gt.s32.totalorder 0, %v806
    %v808 = vsel %vm807, 0, %v806
    %v809 = vsub.s32 32, %v808
    %v810 = vshll.u32 %v801, %v808
    %v811 = vshrl.u32 %v793, %v809
    %v812 = vor.u32 %v810, %v811
    %v813 = vsub.s32 4294967266, %v808
    %v814 = vadd.s32 %v813, 127
    %v815 = vshll.u32 %v814, 23
    %v816 = vor.u32 4788187, %v815
    %v817 = vand.u32 2147483647, %v816
    %v819 = vcvt.s32.f32 %v812
    %v820 = vmul.f32 %v819, %v817
    %v821 = vxor.u32 %v820, 2147483648
    %v822 = vsel %vm739, %v821, %v820
    %v823 = vsub.s32 4, %v799
    %v824 = vsel %vm739, %v823, %v799
    %v825 = vsel %vm738, %v50, %v822
    %v826 = vsel %vm738, 0, %v824
    %v827 = vcosq.f32.pop %v825
    %v828 = vsinq.f32.pop %v825
    %vm829 = vweird.f32 %v50
    %v830 = vand.u32 %v826, 3
    %vm831 = vcmp.lt.s32.totalorder %v830, 2
    %vm832 = vcmp.eq.s32.totalorder %v830, 0
    %v833 = vxor.u32 %v828, 2147483648
    %v834 = vsel %vm832, %v827, %v833
    %vm835 = vcmp.eq.s32.totalorder %v830, 2
    %v836 = vxor.u32 %v827, 2147483648
    %v837 = vsel %vm835, %v836, %v828
    %v838 = vsel %vm831, %v834, %v837
    %v839 = vsel %vm829, nan, %v838
    %v840 = vand.u32 2147483647, %v51
    %vm841 = vcmp.le.f32.partialorder %v840, 0.7853982
    %vm842 = vcmp.lt.s32.totalorder %v51, 0
    %v843 = vand.u32 %v51, 2139095040
    %v844 = vshrl.u32 %v843, 23
    %v845 = vsub.s32 %v844, 127
    %v846 = vand.u32 2147483647, %v51
    %v847 = vand.u32 %v846, 8388607
    %v848 = vor.u32 %v847, 8388608
    %v849 = vsub.s32 0, %v848
    %v850 = vadd.s32 %v845, 1
    %vm851 = vcmp.gt.s32.totalorder %v850, 0
    %v852 = vsel %vm851, %v850, 0
    %v853 = vshrl.u32 %v852, 5
    %v854 = vand.u32 %v852, 31
    %v855 = vsub.s32 32, %v854
    %v856 = vshrl.u32 683565275, %v855
    %v857 = vshll.u32 683565275, %v854
    %v858 = vshrl.u32 2475754826, %v855
    %v859 = vor.u32 %v857, %v858
    %v860 = vshll.u32 2475754826, %v854
    %v861 = vshrl.u32 2131351028, %v855
    %v862 = vor.u32 %v860, %v861
    %v863 = vshll.u32 2131351028, %v854
    %v864 = vshrl.u32 2102212464, %v855
    %v865 = vor.u32 %v863, %v864
    %v866 = vshll.u32 2102212464, %v854
    %v867 = vshrl.u32 920167782, %v855
    %v868 = vor.u32 %v866, %v867
    %v869 = vshll.u32 920167782, %v854
    %v870 = vshrl.u32 1326507024, %v855
    %v871 = vor.u32 %v869, %v870
    %vm872 = vcmp.lt.s32.totalorder %v853, 1
    %vm873 = vcmp.lt.s32.totalorder %v853, 2
    %vm874 = vcmp.lt.s32.totalorder %v853, 3
    %vm875 = vcmp.lt.s32.totalorder %v853, 4
    %v876 = vsel %vm872, %v856, %v859
    %v877 = vsel %vm875, %v865, 2102212464
    %v878 = vsel %vm874, %v862, %v877
    %v879 = vsel %vm873, %v876, %v878
    %v880 = vsel %vm872, %v859, %v862
    %v881 = vsel %vm875, %v868, 920167782
    %v882 = vsel %vm874, %v865, %v881
    %v883 = vsel %vm873, %v880, %v882
    %v884 = vsel %vm872, %v862, %v865
    %v885 = vsel %vm875, %v871, 1326507024
    %v886 = vsel %vm874, %v868, %v885
    %v887 = vsel %vm873, %v884, %v886
    %v888 = vshll.u32 %v848, 8
    %v889 = vmul.u32.u64.compose %v888, %v887
    %v890 = vextract.low.u32 %v889
    %v891 = vextract.high.u32 %v889
    %v892 = vmul.u32.u64.compose %v888, %v883
    %v893 = vextract.low.u32 %v892
    %v894 = vextract.high.u32 %v892
    %v895 = vmul.u32 %v888, %v879
    %v896 = vadd.s32 %v891, %v893
    %vm897 = vc.u32 %v891, %v893
    %v898 = vadd.s32 %v894, 1
    %v899 = vsel %vm897, %v898, %v894
    %v900 = vadd.s32 %v895, %v899
    %v901 = vadd.s32 %v900, 536870912
    %v902 = vshrl.u32 %v901, 30
    %v903 = vshll.u32 %v902, 30
    %v904 = vsub.s32 %v900, %v903
    %vm905 = vcmp.lt.s32.totalorder %v904, 0
    %v906 = vsub.s32 0, %v904
    %v907 = vsel %vm905, %v906, %v904
    %v908 = vclz %v907
    %v909 = vsub.s32 %v908, 2
    %vm910 = vcmp.gt.s32.totalorder 0, %v909
    %v911 = vsel %vm910, 0, %v909
    %v912 = vsub.s32 32, %v911
    %v913 = vshll.u32 %v904, %v911
    %v914 = vshrl.u32 %v896, %v912
    %v915 = vor.u32 %v913, %v914
    %v916 = vsub.s32 4294967266, %v911
    %v917 = vadd.s32 %v916, 127
    %v918 = vshll.u32 %v917, 23
    %v919 = vor.u32 4788187, %v918
    %v920 = vand.u32 2147483647, %v919
    %v922 = vcvt.s32.f32 %v915
    %v923 = vmul.f32 %v922, %v920
    %v924 = vxor.u32 %v923, 2147483648
    %v925 = vsel %vm842, %v924, %v923
    %v926 = vsub.s32 4, %v902
    %v927 = vsel %vm842, %v926, %v902
    %v928 = vsel %vm841, %v51, %v925
    %v929 = vsel %vm841, 0, %v927
    %v930 = vcosq.f32.pop %v928
    %v931 = vsinq.f32.pop %v928
    %vm932 = vweird.f32 %v51
    %v933 = vand.u32 %v929, 3
    %vm934 = vcmp.lt.s32.totalorder %v933, 2
    %vm935 = vcmp.eq.s32.totalorder %v933, 0
    %v936 = vxor.u32 %v931, 2147483648
    %v937 = vsel %vm935, %v930, %v936
    %vm938 = vcmp.eq.s32.totalorder %v933, 2
    %v939 = vxor.u32 %v930, 2147483648
    %v940 = vsel %vm938, %v939, %v931
    %v941 = vsel %vm934, %v937, %v940
    %v942 = vsel %vm932, nan, %v941
    %v943 = vmul.f32 %v517, %v633
    %v944 = vmul.f32 %v519, %v736
    %v945 = vmul.f32 %v521, %v839
    %v946 = vmul.f32 %v523, %v942
    %v947 = vsel %vm504, %v943, 0.0
    %v948 = vsel %vm504, %v944, 0.0
    %v949 = vadd.f32 %v947, %v948
    %v950 = vsel %vm504, %v945, 0.0
    %v951 = vadd.f32 %v949, %v950
    %v952 = vsel %vm504, %v946, 0.0
    %v953 = vadd.f32 %v951, %v952
    %v954 = vand.u32 2147483647, %v48
    %vm955 = vcmp.le.f32.partialorder %v954, 0.7853982
    %vm956 = vcmp.lt.s32.totalorder %v48, 0
    %v957 = vand.u32 %v48, 2139095040
    %v958 = vshrl.u32 %v957, 23
    %v959 = vsub.s32 %v958, 127
    %v960 = vand.u32 2147483647, %v48
    %v961 = vand.u32 %v960, 8388607
    %v962 = vor.u32 %v961, 8388608
    %v963 = vsub.s32 0, %v962
    %v964 = vadd.s32 %v959, 1
    %vm965 = vcmp.gt.s32.totalorder %v964, 0
    %v966 = vsel %vm965, %v964, 0
    %v967 = vshrl.u32 %v966, 5
    %v968 = vand.u32 %v966, 31
    %v969 = vsub.s32 32, %v968
    %v970 = vshrl.u32 683565275, %v969
    %v971 = vshll.u32 683565275, %v968
    %v972 = vshrl.u32 2475754826, %v969
    %v973 = vor.u32 %v971, %v972
    %v974 = vshll.u32 2475754826, %v968
    %v975 = vshrl.u32 2131351028, %v969
    %v976 = vor.u32 %v974, %v975
    %v977 = vshll.u32 2131351028, %v968
    %v978 = vshrl.u32 2102212464, %v969
    %v979 = vor.u32 %v977, %v978
    %v980 = vshll.u32 2102212464, %v968
    %v981 = vshrl.u32 920167782, %v969
    %v982 = vor.u32 %v980, %v981
    %v983 = vshll.u32 920167782, %v968
    %v984 = vshrl.u32 1326507024, %v969
    %v985 = vor.u32 %v983, %v984
    %vm986 = vcmp.lt.s32.totalorder %v967, 1
    %vm987 = vcmp.lt.s32.totalorder %v967, 2
    %vm988 = vcmp.lt.s32.totalorder %v967, 3
    %vm989 = vcmp.lt.s32.totalorder %v967, 4
    %v990 = vsel %vm986, %v970, %v973
    %v991 = vsel %vm989, %v979, 2102212464
    %v992 = vsel %vm988, %v976, %v991
    %v993 = vsel %vm987, %v990, %v992
    %v994 = vsel %vm986, %v973, %v976
    %v995 = vsel %vm989, %v982, 920167782
    %v996 = vsel %vm988, %v979, %v995
    %v997 = vsel %vm987, %v994, %v996
    %v998 = vsel %vm986, %v976, %v979
    %v999 = vsel %vm989, %v985, 1326507024
    %v1000 = vsel %vm988, %v982, %v999
    %v1001 = vsel %vm987, %v998, %v1000
    %v1002 = vshll.u32 %v962, 8
    %v1003 = vmul.u32.u64.compose %v1002, %v1001
    %v1004 = vextract.low.u32 %v1003
    %v1005 = vextract.high.u32 %v1003
    %v1006 = vmul.u32.u64.compose %v1002, %v997
    %v1007 = vextract.low.u32 %v1006
    %v1008 = vextract.high.u32 %v1006
    %v1009 = vmul.u32 %v1002, %v993
    %v1010 = vadd.s32 %v1005, %v1007
    %vm1011 = vc.u32 %v1005, %v1007
    %v1012 = vadd.s32 %v1008, 1
    %v1013 = vsel %vm1011, %v1012, %v1008
    %v1014 = vadd.s32 %v1009, %v1013
    %v1015 = vadd.s32 %v1014, 536870912
    %v1016 = vshrl.u32 %v1015, 30
    %v1017 = vshll.u32 %v1016, 30
    %v1018 = vsub.s32 %v1014, %v1017
    %vm1019 = vcmp.lt.s32.totalorder %v1018, 0
    %v1020 = vsub.s32 0, %v1018
    %v1021 = vsel %vm1019, %v1020, %v1018
    %v1022 = vclz %v1021
    %v1023 = vsub.s32 %v1022, 2
    %vm1024 = vcmp.gt.s32.totalorder 0, %v1023
    %v1025 = vsel %vm1024, 0, %v1023
    %v1026 = vsub.s32 32, %v1025
    %v1027 = vshll.u32 %v1018, %v1025
    %v1028 = vshrl.u32 %v1010, %v1026
    %v1029 = vor.u32 %v1027, %v1028
    %v1030 = vsub.s32 4294967266, %v1025
    %v1031 = vadd.s32 %v1030, 127
    %v1032 = vshll.u32 %v1031, 23
    %v1033 = vor.u32 4788187, %v1032
    %v1034 = vand.u32 2147483647, %v1033
    %v1036 = vcvt.s32.f32 %v1029
    %v1037 = vmul.f32 %v1036, %v1034
    %v1038 = vxor.u32 %v1037, 2147483648
    %v1039 = vsel %vm956, %v1038, %v1037
    %v1040 = vsub.s32 4, %v1016
    %v1041 = vsel %vm956, %v1040, %v1016
    %v1042 = vsel %vm955, %v48, %v1039
    %v1043 = vsel %vm955, 0, %v1041
    %v1044 = vcosq.f32.pop %v1042
    %v1045 = vsinq.f32.pop %v1042
    %vm1046 = vweird.f32 %v48
    %v1047 = vadd.s32 %v1043, 3
    %v1048 = vand.u32 %v1047, 3
    %vm1049 = vcmp.lt.s32.totalorder %v1048, 2
    %vm1050 = vcmp.eq.s32.totalorder %v1048, 0
    %v1051 = vxor.u32 %v1045, 2147483648
    %v1052 = vsel %vm1050, %v1044, %v1051
    %vm1053 = vcmp.eq.s32.totalorder %v1048, 2
    %v1054 = vxor.u32 %v1044, 2147483648
    %v1055 = vsel %vm1053, %v1054, %v1045
    %v1056 = vsel %vm1049, %v1052, %v1055
    %v1057 = vsel %vm1046, nan, %v1056
    %v1058 = vand.u32 2147483647, %v49
    %vm1059 = vcmp.le.f32.partialorder %v1058, 0.7853982
    %vm1060 = vcmp.lt.s32.totalorder %v49, 0
    %v1061 = vand.u32 %v49, 2139095040
    %v1062 = vshrl.u32 %v1061, 23
    %v1063 = vsub.s32 %v1062, 127
    %v1064 = vand.u32 2147483647, %v49
    %v1065 = vand.u32 %v1064, 8388607
    %v1066 = vor.u32 %v1065, 8388608
    %v1067 = vsub.s32 0, %v1066
    %v1068 = vadd.s32 %v1063, 1
    %vm1069 = vcmp.gt.s32.totalorder %v1068, 0
    %v1070 = vsel %vm1069, %v1068, 0
    %v1071 = vshrl.u32 %v1070, 5
    %v1072 = vand.u32 %v1070, 31
    %v1073 = vsub.s32 32, %v1072
    %v1074 = vshrl.u32 683565275, %v1073
    %v1075 = vshll.u32 683565275, %v1072
    %v1076 = vshrl.u32 2475754826, %v1073
    %v1077 = vor.u32 %v1075, %v1076
    %v1078 = vshll.u32 2475754826, %v1072
    %v1079 = vshrl.u32 2131351028, %v1073
    %v1080 = vor.u32 %v1078, %v1079
    %v1081 = vshll.u32 2131351028, %v1072
    %v1082 = vshrl.u32 2102212464, %v1073
    %v1083 = vor.u32 %v1081, %v1082
    %v1084 = vshll.u32 2102212464, %v1072
    %v1085 = vshrl.u32 920167782, %v1073
    %v1086 = vor.u32 %v1084, %v1085
    %v1087 = vshll.u32 920167782, %v1072
    %v1088 = vshrl.u32 1326507024, %v1073
    %v1089 = vor.u32 %v1087, %v1088
    %vm1090 = vcmp.lt.s32.totalorder %v1071, 1
    %vm1091 = vcmp.lt.s32.totalorder %v1071, 2
    %vm1092 = vcmp.lt.s32.totalorder %v1071, 3
    %vm1093 = vcmp.lt.s32.totalorder %v1071, 4
    %v1094 = vsel %vm1090, %v1074, %v1077
    %v1095 = vsel %vm1093, %v1083, 2102212464
    %v1096 = vsel %vm1092, %v1080, %v1095
    %v1097 = vsel %vm1091, %v1094, %v1096
    %v1098 = vsel %vm1090, %v1077, %v1080
    %v1099 = vsel %vm1093, %v1086, 920167782
    %v1100 = vsel %vm1092, %v1083, %v1099
    %v1101 = vsel %vm1091, %v1098, %v1100
    %v1102 = vsel %vm1090, %v1080, %v1083
    %v1103 = vsel %vm1093, %v1089, 1326507024
    %v1104 = vsel %vm1092, %v1086, %v1103
    %v1105 = vsel %vm1091, %v1102, %v1104
    %v1106 = vshll.u32 %v1066, 8
    %v1107 = vmul.u32.u64.compose %v1106, %v1105
    %v1108 = vextract.low.u32 %v1107
    %v1109 = vextract.high.u32 %v1107
    %v1110 = vmul.u32.u64.compose %v1106, %v1101
    %v1111 = vextract.low.u32 %v1110
    %v1112 = vextract.high.u32 %v1110
    %v1113 = vmul.u32 %v1106, %v1097
    %v1114 = vadd.s32 %v1109, %v1111
    %vm1115 = vc.u32 %v1109, %v1111
    %v1116 = vadd.s32 %v1112, 1
    %v1117 = vsel %vm1115, %v1116, %v1112
    %v1118 = vadd.s32 %v1113, %v1117
    %v1119 = vadd.s32 %v1118, 536870912
    %v1120 = vshrl.u32 %v1119, 30
    %v1121 = vshll.u32 %v1120, 30
    %v1122 = vsub.s32 %v1118, %v1121
    %vm1123 = vcmp.lt.s32.totalorder %v1122, 0
    %v1124 = vsub.s32 0, %v1122
    %v1125 = vsel %vm1123, %v1124, %v1122
    %v1126 = vclz %v1125
    %v1127 = vsub.s32 %v1126, 2
    %vm1128 = vcmp.gt.s32.totalorder 0, %v1127
    %v1129 = vsel %vm1128, 0, %v1127
    %v1130 = vsub.s32 32, %v1129
    %v1131 = vshll.u32 %v1122, %v1129
    %v1132 = vshrl.u32 %v1114, %v1130
    %v1133 = vor.u32 %v1131, %v1132
    %v1134 = vsub.s32 4294967266, %v1129
    %v1135 = vadd.s32 %v1134, 127
    %v1136 = vshll.u32 %v1135, 23
    %v1137 = vor.u32 4788187, %v1136
    %v1138 = vand.u32 2147483647, %v1137
    %v1140 = vcvt.s32.f32 %v1133
    %v1141 = vmul.f32 %v1140, %v1138
    %v1142 = vxor.u32 %v1141, 2147483648
    %v1143 = vsel %vm1060, %v1142, %v1141
    %v1144 = vsub.s32 4, %v1120
    %v1145 = vsel %vm1060, %v1144, %v1120
    %v1146 = vsel %vm1059, %v49, %v1143
    %v1147 = vsel %vm1059, 0, %v1145
    %v1148 = vcosq.f32.pop %v1146
    %v1149 = vsinq.f32.pop %v1146
    %vm1150 = vweird.f32 %v49
    %v1151 = vadd.s32 %v1147, 3
    %v1152 = vand.u32 %v1151, 3
    %vm1153 = vcmp.lt.s32.totalorder %v1152, 2
    %vm1154 = vcmp.eq.s32.totalorder %v1152, 0
    %v1155 = vxor.u32 %v1149, 2147483648
    %v1156 = vsel %vm1154, %v1148, %v1155
    %vm1157 = vcmp.eq.s32.totalorder %v1152, 2
    %v1158 = vxor.u32 %v1148, 2147483648
    %v1159 = vsel %vm1157, %v1158, %v1149
    %v1160 = vsel %vm1153, %v1156, %v1159
    %v1161 = vsel %vm1150, nan, %v1160
    %v1162 = vand.u32 2147483647, %v50
    %vm1163 = vcmp.le.f32.partialorder %v1162, 0.7853982
    %vm1164 = vcmp.lt.s32.totalorder %v50, 0
    %v1165 = vand.u32 %v50, 2139095040
    %v1166 = vshrl.u32 %v1165, 23
    %v1167 = vsub.s32 %v1166, 127
    %v1168 = vand.u32 2147483647, %v50
    %v1169 = vand.u32 %v1168, 8388607
    %v1170 = vor.u32 %v1169, 8388608
    %v1171 = vsub.s32 0, %v1170
    %v1172 = vadd.s32 %v1167, 1
    %vm1173 = vcmp.gt.s32.totalorder %v1172, 0
    %v1174 = vsel %vm1173, %v1172, 0
    %v1175 = vshrl.u32 %v1174, 5
    %v1176 = vand.u32 %v1174, 31
    %v1177 = vsub.s32 32, %v1176
    %v1178 = vshrl.u32 683565275, %v1177
    %v1179 = vshll.u32 683565275, %v1176
    %v1180 = vshrl.u32 2475754826, %v1177
    %v1181 = vor.u32 %v1179, %v1180
    %v1182 = vshll.u32 2475754826, %v1176
    %v1183 = vshrl.u32 2131351028, %v1177
    %v1184 = vor.u32 %v1182, %v1183
    %v1185 = vshll.u32 2131351028, %v1176
    %v1186 = vshrl.u32 2102212464, %v1177
    %v1187 = vor.u32 %v1185, %v1186
    %v1188 = vshll.u32 2102212464, %v1176
    %v1189 = vshrl.u32 920167782, %v1177
    %v1190 = vor.u32 %v1188, %v1189
    %v1191 = vshll.u32 920167782, %v1176
    %v1192 = vshrl.u32 1326507024, %v1177
    %v1193 = vor.u32 %v1191, %v1192
    %vm1194 = vcmp.lt.s32.totalorder %v1175, 1
    %vm1195 = vcmp.lt.s32.totalorder %v1175, 2
    %vm1196 = vcmp.lt.s32.totalorder %v1175, 3
    %vm1197 = vcmp.lt.s32.totalorder %v1175, 4
    %v1198 = vsel %vm1194, %v1178, %v1181
    %v1199 = vsel %vm1197, %v1187, 2102212464
    %v1200 = vsel %vm1196, %v1184, %v1199
    %v1201 = vsel %vm1195, %v1198, %v1200
    %v1202 = vsel %vm1194, %v1181, %v1184
    %v1203 = vsel %vm1197, %v1190, 920167782
    %v1204 = vsel %vm1196, %v1187, %v1203
    %v1205 = vsel %vm1195, %v1202, %v1204
    %v1206 = vsel %vm1194, %v1184, %v1187
    %v1207 = vsel %vm1197, %v1193, 1326507024
    %v1208 = vsel %vm1196, %v1190, %v1207
    %v1209 = vsel %vm1195, %v1206, %v1208
    %v1210 = vshll.u32 %v1170, 8
    %v1211 = vmul.u32.u64.compose %v1210, %v1209
    %v1212 = vextract.low.u32 %v1211
    %v1213 = vextract.high.u32 %v1211
    %v1214 = vmul.u32.u64.compose %v1210, %v1205
    %v1215 = vextract.low.u32 %v1214
    %v1216 = vextract.high.u32 %v1214
    %v1217 = vmul.u32 %v1210, %v1201
    %v1218 = vadd.s32 %v1213, %v1215
    %vm1219 = vc.u32 %v1213, %v1215
    %v1220 = vadd.s32 %v1216, 1
    %v1221 = vsel %vm1219, %v1220, %v1216
    %v1222 = vadd.s32 %v1217, %v1221
    %v1223 = vadd.s32 %v1222, 536870912
    %v1224 = vshrl.u32 %v1223, 30
    %v1225 = vshll.u32 %v1224, 30
    %v1226 = vsub.s32 %v1222, %v1225
    %vm1227 = vcmp.lt.s32.totalorder %v1226, 0
    %v1228 = vsub.s32 0, %v1226
    %v1229 = vsel %vm1227, %v1228, %v1226
    %v1230 = vclz %v1229
    %v1231 = vsub.s32 %v1230, 2
    %vm1232 = vcmp.gt.s32.totalorder 0, %v1231
    %v1233 = vsel %vm1232, 0, %v1231
    %v1234 = vsub.s32 32, %v1233
    %v1235 = vshll.u32 %v1226, %v1233
    %v1236 = vshrl.u32 %v1218, %v1234
    %v1237 = vor.u32 %v1235, %v1236
    %v1238 = vsub.s32 4294967266, %v1233
    %v1239 = vadd.s32 %v1238, 127
    %v1240 = vshll.u32 %v1239, 23
    %v1241 = vor.u32 4788187, %v1240
    %v1242 = vand.u32 2147483647, %v1241
    %v1244 = vcvt.s32.f32 %v1237
    %v1245 = vmul.f32 %v1244, %v1242
    %v1246 = vxor.u32 %v1245, 2147483648
    %v1247 = vsel %vm1164, %v1246, %v1245
    %v1248 = vsub.s32 4, %v1224
    %v1249 = vsel %vm1164, %v1248, %v1224
    %v1250 = vsel %vm1163, %v50, %v1247
    %v1251 = vsel %vm1163, 0, %v1249
    %v1252 = vcosq.f32.pop %v1250
    %v1253 = vsinq.f32.pop %v1250
    %vm1254 = vweird.f32 %v50
    %v1255 = vadd.s32 %v1251, 3
    %v1256 = vand.u32 %v1255, 3
    %vm1257 = vcmp.lt.s32.totalorder %v1256, 2
    %vm1258 = vcmp.eq.s32.totalorder %v1256, 0
    %v1259 = vxor.u32 %v1253, 2147483648
    %v1260 = vsel %vm1258, %v1252, %v1259
    %vm1261 = vcmp.eq.s32.totalorder %v1256, 2
    %v1262 = vxor.u32 %v1252, 2147483648
    %v1263 = vsel %vm1261, %v1262, %v1253
    %v1264 = vsel %vm1257, %v1260, %v1263
    %v1265 = vsel %vm1254, nan, %v1264
    %v1266 = vand.u32 2147483647, %v51
    %vm1267 = vcmp.le.f32.partialorder %v1266, 0.7853982
    %vm1268 = vcmp.lt.s32.totalorder %v51, 0
    %v1269 = vand.u32 %v51, 2139095040
    %v1270 = vshrl.u32 %v1269, 23
    %v1271 = vsub.s32 %v1270, 127
    %v1272 = vand.u32 2147483647, %v51
    %v1273 = vand.u32 %v1272, 8388607
    %v1274 = vor.u32 %v1273, 8388608
    %v1275 = vsub.s32 0, %v1274
    %v1276 = vadd.s32 %v1271, 1
    %vm1277 = vcmp.gt.s32.totalorder %v1276, 0
    %v1278 = vsel %vm1277, %v1276, 0
    %v1279 = vshrl.u32 %v1278, 5
    %v1280 = vand.u32 %v1278, 31
    %v1281 = vsub.s32 32, %v1280
    %v1282 = vshrl.u32 683565275, %v1281
    %v1283 = vshll.u32 683565275, %v1280
    %v1284 = vshrl.u32 2475754826, %v1281
    %v1285 = vor.u32 %v1283, %v1284
    %v1286 = vshll.u32 2475754826, %v1280
    %v1287 = vshrl.u32 2131351028, %v1281
    %v1288 = vor.u32 %v1286, %v1287
    %v1289 = vshll.u32 2131351028, %v1280
    %v1290 = vshrl.u32 2102212464, %v1281
    %v1291 = vor.u32 %v1289, %v1290
    %v1292 = vshll.u32 2102212464, %v1280
    %v1293 = vshrl.u32 920167782, %v1281
    %v1294 = vor.u32 %v1292, %v1293
    %v1295 = vshll.u32 920167782, %v1280
    %v1296 = vshrl.u32 1326507024, %v1281
    %v1297 = vor.u32 %v1295, %v1296
    %vm1298 = vcmp.lt.s32.totalorder %v1279, 1
    %vm1299 = vcmp.lt.s32.totalorder %v1279, 2
    %vm1300 = vcmp.lt.s32.totalorder %v1279, 3
    %vm1301 = vcmp.lt.s32.totalorder %v1279, 4
    %v1302 = vsel %vm1298, %v1282, %v1285
    %v1303 = vsel %vm1301, %v1291, 2102212464
    %v1304 = vsel %vm1300, %v1288, %v1303
    %v1305 = vsel %vm1299, %v1302, %v1304
    %v1306 = vsel %vm1298, %v1285, %v1288
    %v1307 = vsel %vm1301, %v1294, 920167782
    %v1308 = vsel %vm1300, %v1291, %v1307
    %v1309 = vsel %vm1299, %v1306, %v1308
    %v1310 = vsel %vm1298, %v1288, %v1291
    %v1311 = vsel %vm1301, %v1297, 1326507024
    %v1312 = vsel %vm1300, %v1294, %v1311
    %v1313 = vsel %vm1299, %v1310, %v1312
    %v1314 = vshll.u32 %v1274, 8
    %v1315 = vmul.u32.u64.compose %v1314, %v1313
    %v1316 = vextract.low.u32 %v1315
    %v1317 = vextract.high.u32 %v1315
    %v1318 = vmul.u32.u64.compose %v1314, %v1309
    %v1319 = vextract.low.u32 %v1318
    %v1320 = vextract.high.u32 %v1318
    %v1321 = vmul.u32 %v1314, %v1305
    %v1322 = vadd.s32 %v1317, %v1319
    %vm1323 = vc.u32 %v1317, %v1319
    %v1324 = vadd.s32 %v1320, 1
    %v1325 = vsel %vm1323, %v1324, %v1320
    %v1326 = vadd.s32 %v1321, %v1325
    %v1327 = vadd.s32 %v1326, 536870912
    %v1328 = vshrl.u32 %v1327, 30
    %v1329 = vshll.u32 %v1328, 30
    %v1330 = vsub.s32 %v1326, %v1329
    %vm1331 = vcmp.lt.s32.totalorder %v1330, 0
    %v1332 = vsub.s32 0, %v1330
    %v1333 = vsel %vm1331, %v1332, %v1330
    %v1334 = vclz %v1333
    %v1335 = vsub.s32 %v1334, 2
    %vm1336 = vcmp.gt.s32.totalorder 0, %v1335
    %v1337 = vsel %vm1336, 0, %v1335
    %v1338 = vsub.s32 32, %v1337
    %v1339 = vshll.u32 %v1330, %v1337
    %v1340 = vshrl.u32 %v1322, %v1338
    %v1341 = vor.u32 %v1339, %v1340
    %v1342 = vsub.s32 4294967266, %v1337
    %v1343 = vadd.s32 %v1342, 127
    %v1344 = vshll.u32 %v1343, 23
    %v1345 = vor.u32 4788187, %v1344
    %v1346 = vand.u32 2147483647, %v1345
    %v1348 = vcvt.s32.f32 %v1341
    %v1349 = vmul.f32 %v1348, %v1346
    %v1350 = vxor.u32 %v1349, 2147483648
    %v1351 = vsel %vm1268, %v1350, %v1349
    %v1352 = vsub.s32 4, %v1328
    %v1353 = vsel %vm1268, %v1352, %v1328
    %v1354 = vsel %vm1267, %v51, %v1351
    %v1355 = vsel %vm1267, 0, %v1353
    %v1356 = vcosq.f32.pop %v1354
    %v1357 = vsinq.f32.pop %v1354
    %vm1358 = vweird.f32 %v51
    %v1359 = vadd.s32 %v1355, 3
    %v1360 = vand.u32 %v1359, 3
    %vm1361 = vcmp.lt.s32.totalorder %v1360, 2
    %vm1362 = vcmp.eq.s32.totalorder %v1360, 0
    %v1363 = vxor.u32 %v1357, 2147483648
    %v1364 = vsel %vm1362, %v1356, %v1363
    %vm1365 = vcmp.eq.s32.totalorder %v1360, 2
    %v1366 = vxor.u32 %v1356, 2147483648
    %v1367 = vsel %vm1365, %v1366, %v1357
    %v1368 = vsel %vm1361, %v1364, %v1367
    %v1369 = vsel %vm1358, nan, %v1368
    %v1370 = vmul.f32 %v517, %v1057
    %v1371 = vmul.f32 %v519, %v1161
    %v1372 = vmul.f32 %v521, %v1265
    %v1373 = vmul.f32 %v523, %v1369
    %v1374 = vsel %vm504, %v1370, 0.0
    %v1375 = vsel %vm504, %v1371, 0.0
    %v1376 = vadd.f32 %v1374, %v1375
    %v1377 = vsel %vm504, %v1372, 0.0
    %v1378 = vadd.f32 %v1376, %v1377
    %v1379 = vsel %vm504, %v1373, 0.0
    %v1380 = vadd.f32 %v1378, %v1379
    %v1381 = vrcp.pop %v530
    %v1382 = vmul.f32 %v953, %v1381
    %v1383 = vmul.f32 %v1380, %v1381
    %v1384 = vand.u32 2147483647, %v1382
    %vm1385 = vcmp.lt.f32.partialorder %v1384, 0.001
    %v1386 = vsel %vm1385, 0.001, %v1382
    %v1387 = vrcp.pop %v1386
    %v1388 = vmul.f32 %v1383, %v1387
    %v1389 = vand.u32 2147483647, %v1388
    %vm1390 = vcmp.gt.f32.partialorder %v1389, 2.4142137
    %vm1391 = vcmp.gt.f32.partialorder %v1389, 0.41421357
    %v1392 = vsel %vm1391, 0.7853982, 0.0
    %v1393 = vsel %vm1390, 1.5707964, %v1392
    %v1394 = vsub.f32 %v1389, 1.0
    %v1395 = vsel %vm1390, -1.0, %v1394
    %v1396 = vadd.f32 %v1389, 1.0
    %v1397 = vsel %vm1390, %v1389, %v1396
    %v1398 = vrcp.pop %v1397
    %v1399 = vmul.f32 %v1395, %v1398
    %v1400 = vsel %vm1391, %v1399, %v1389
    %v1401 = vmul.f32 %v1400, %v1400
    %v1402 = vmul.f32 %v1401, 0.080537446
    %v1403 = vsub.f32 %v1402, 0.13877685
    %v1404 = vmul.f32 %v1403, %v1401
    %v1405 = vadd.f32 %v1404, 0.19977711
    %v1406 = vmul.f32 %v1405, %v1401
    %v1407 = vsub.f32 %v1406, 0.3333295
    %v1408 = vmul.f32 %v1407, %v1401
    %v1409 = vmul.f32 %v1408, %v1400
    %v1410 = vadd.f32 %v1409, %v1400
    %v1411 = vadd.f32 %v1393, %v1410
    %vm1412 = vcmp.lt.f32.partialorder %v1388, 0.0
    %v1413 = vsub.f32 0.0, %v1411
    %v1414 = vsel %vm1412, %v1413, %v1411
    %vm1415 = vcmp.lt.f32.partialorder %v1386, 0.0
    %vm1416 = vcmp.lt.f32.partialorder %v1383, 0.0
    %vm1417 = vmxor %vm1416, 1
    %vm1418 = vmand %vm1415, %vm1417
    %v1419 = vadd.f32 %v1414, 3.1415927
    %v1420 = vsel %vm1418, %v1419, %v1414
    %vm1421 = vmand %vm1415, %vm1416
    %v1422 = vsub.f32 %v1420, 3.1415927
    %v1423 = vsel %vm1421, %v1422, %v1420
    %v1426 = vunpack.c.l.s4 1966171168
    %v1427 = vunpack.c.0.s8 %v1426
    %v1428 = vlaneseq
    %v1429 = vshrl.u32 %v1428, 7
    %v1430 = vsub.s32 %v1427, %v1429
    %v1431 = vrot.slane %v370, %v1430
    %v1432 = vcombine.high %v1431, %v1431
    %v1434 = vunpack.c.l.s4 1966171168
    %v1435 = vunpack.c.0.s8 %v1434
    %v1436 = vlaneseq
    %v1437 = vshrl.u32 %v1436, 7
    %v1438 = vsub.s32 %v1435, %v1437
    %v1439 = vrot.slane %v1431, %v1438
    %v1441 = vunpack.c.l.s4 1966171168
    %v1442 = vunpack.c.0.s8 %v1441
    %v1443 = vlaneseq
    %v1444 = vshrl.u32 %v1443, 7
    %v1445 = vsub.s32 %v1442, %v1444
    %v1446 = vrot.slane %v1432, %v1445
    %v1447 = vcombine.high %v1439, %v1439
    %v1448 = vcombine.high %v1446, %v1446
    %v1453 = vunpack.c.l.bf16 %v1439
    %v1454 = vunpack.c.l.bf16 %v1446
    %v1455 = vunpack.c.l.bf16 %v1447
    %v1456 = vunpack.c.l.bf16 %v1448
    %vm1457 = vcmask 1041408
    %v1458 = vsel %vm1457, %v1453, 0.0
    %v1459 = vsel %vm1457, %v1454, 0.0
    %v1460 = vadd.f32 %v1458, %v1459
    %v1461 = vsel %vm1457, %v1455, 0.0
    %v1462 = vadd.f32 %v1460, %v1461
    %v1463 = vsel %vm1457, %v1456, 0.0
    %v1464 = vadd.f32 %v1462, %v1463
    %v1465 = vmul.f32 %v1464, 0.25
    %v1466 = vpack.c.bf16 %v1465, %v1465
    %v1467 = vld [vmem:[%s6] sm:$0xf]
    %v1468 = vld [vmem:[%s6 + $0x4] sm:$0xf]
    %v1469 = vld [vmem:[%s6 + $0x8] sm:$0xf]
    %v1470 = vld [vmem:[%s6 + $0xc] sm:$0xf]
    %v1471 = vld [vmem:[%s6 + $0x10] sm:$0xf]
    %v1472 = vld [vmem:[%s6 + $0x14] sm:$0xf]
    %v1473 = vld [vmem:[%s6 + $0x18] sm:$0xf]
    %v1474 = vld [vmem:[%s6 + $0x1c] sm:$0xf]
    %v1475 = vld [vmem:[%s6 + $0x20] sm:$0xf]
    %v1476 = vld [vmem:[%s6 + $0x24] sm:$0xf]
    %v1477 = vld [vmem:[%s6 + $0x28] sm:$0xf]
    %v1478 = vld [vmem:[%s6 + $0x2c] sm:$0xf]
    %v1479 = vld [vmem:[%s6 + $0x30] sm:$0xf]
    %v1480 = vld [vmem:[%s6 + $0x34] sm:$0xf]
    %v1481 = vld [vmem:[%s6 + $0x38] sm:$0xf]
    %v1482 = vld [vmem:[%s6 + $0x3c] sm:$0xf]
    %v1483 = vld [vmem:[%s7] sm:$0x1]
    %v1485 = vlaneseq
    %v1486 = vshrl.u32 %v1485, 7
    %v1487 = vsub.s32 0, %v1486
    %v1488 = vrot.slane %v1483, %v1487
    %v1506 = vunpack.c.l.b16 %v1467
    %v1507 = vunpack.c.l.b16 %v1468
    %v1508 = vunpack.c.l.b16 %v1469
    %v1509 = vunpack.c.l.b16 %v1470
    %v1510 = vunpack.c.l.b16 %v1471
    %v1511 = vunpack.c.l.b16 %v1472
    %v1512 = vunpack.c.l.b16 %v1473
    %v1513 = vunpack.c.l.b16 %v1474
    %v1514 = vunpack.c.l.b16 %v1475
    %v1515 = vunpack.c.l.b16 %v1476
    %v1516 = vunpack.c.l.b16 %v1477
    %v1517 = vunpack.c.l.b16 %v1478
    %v1518 = vunpack.c.l.b16 %v1479
    %v1519 = vunpack.c.l.b16 %v1480
    %v1520 = vunpack.c.l.b16 %v1481
    %v1521 = vunpack.c.l.b16 %v1482
    %v1522 = vpack.c.b16 %v1507, %v1506
    %v1523 = vpack.c.b16 %v1509, %v1508
    %v1524 = vpack.c.b16 %v1511, %v1510
    %v1525 = vpack.c.b16 %v1513, %v1512
    %v1526 = vpack.c.b16 %v1515, %v1514
    %v1527 = vpack.c.b16 %v1517, %v1516
    %v1528 = vpack.c.b16 %v1519, %v1518
    %v1529 = vpack.c.b16 %v1521, %v1520
    %1538 = vmatprep.subr.bf16.mxu0 0
    %1539 = vmatpush1.bf16.msra.mxu0 %v1529
    %1540 = vmatprep.subr.bf16.mxu0 0
    %1541 = vmatpush1.bf16.msra.mxu0 %v1528
    %1542 = vmatprep.subr.bf16.mxu0 0
    %1543 = vmatpush1.bf16.msra.mxu0 %v1527
    %1544 = vmatprep.subr.bf16.mxu0 0
    %1545 = vmatpush1.bf16.msra.mxu0 %v1526
    %1546 = vmatprep.subr.bf16.mxu0 0
    %1547 = vmatpush1.bf16.msra.mxu0 %v1525
    %1548 = vmatprep.subr.bf16.mxu0 0
    %1549 = vmatpush1.bf16.msra.mxu0 %v1524
    %1550 = vmatprep.subr.bf16.mxu0 0
    %1551 = vmatpush1.bf16.msra.mxu0 %v1523
    %1552 = vmatprep.subr.bf16.mxu0 0
    %1553 = vmatpush1.bf16.msra.mxu0 %v1522
    %1554 = vmatprep.subr.bf16.mxu0 0
    %1555 = vmatpush2.bf16.msra.mxu0 0
    %1556 = vmatprep.subr.bf16.mxu0 0
    %1557 = vmatpush2.bf16.msra.mxu0 0
    %1558 = vmatprep.subr.bf16.mxu0 0
    %1559 = vmatpush2.bf16.msra.mxu0 0
    %1560 = vmatprep.subr.bf16.mxu0 0
    %1561 = vmatpush2.bf16.msra.mxu0 0
    %1562 = vmatprep.subr.bf16.mxu0 0
    %1563 = vmatpush2.bf16.msra.mxu0 0
    %1564 = vmatprep.subr.bf16.mxu0 0
    %1565 = vmatpush2.bf16.msra.mxu0 0
    %1566 = vmatprep.subr.bf16.mxu0 0
    %1567 = vmatpush2.bf16.msra.mxu0 0
    %1568 = vmatprep.subr.bf16.mxu0 0
    %1569 = vmatpush2.bf16.msra.mxu0 0
    %1570 = vmatprep.mubr.bf16.mxu0 0
    %1571 = vmatmul.mubr.bf16.gmra.mxu0 %v1466
    %v1572 = vpop.f32.mrf.mxu0
    %v1573 = vadd.f32 %v1488, %v1572
    %v1574 = vpop.f32.mrf.mxu0
    %v1575 = vpop.f32.mrf.mxu0
    %v1576 = vpop.f32.mrf.mxu0
    %1577 = vdwg.mxu0
    %v1578 = vsub.f32 0.0, %v1573
    %v1579 = vmul.f32 %v1578, 1.442695
    %v1580 = vpow.pop %v1579
    %v1581 = vadd.f32 %v1580, 1.0
    %v1582 = vrcp.pop %v1581
    %v1583 = vsel %vm504, %v52, inf
    %v1584 = vsel %vm504, %v53, inf
    %v1585 = vsel %vm504, %v54, inf
    %v1586 = vsel %vm504, %v55, inf
    %v1587 = vmin.f32 %v1583, %v1584
    %v1588 = vmin.f32 %v1585, %v1586
    %v1589 = vmin.f32 %v1587, %v1588
    %1590 = vst.msk [vmem:[#allocation6] sm:$0x3] %vm504, %v1423
    %v1591 = vmul.f32 %v1589, %v1582
    %1592 = vst.msk [vmem:[#allocation7] sm:$0x3] %vm504, %v1591
    // Predicated region
    $region38: #{_cone_intersection_impl.1} parent=1 // pred_check
      _
    $region39: #{_cone_intersection_impl.1} parent=1 // pred_check_branch
      %1594 = sbr.rel (0) target = $region41
    $region40: #{_cone_intersection_impl.1} parent=1 // pred_region
      %s1596 = ssub.s32 32, 32
      %1597 = vsyncadd [#allocation5], %s1596
      %s1599 = sshll.u32 [#allocation6], 4
      %s1600 = int_to_ptr.vmem [resolvable:$true] %s1599
      %1602 = dma.vmem_to_hbm [thread:$0]  %s1600, 32, %s8, [#allocation5]
    $region41: #{_cone_intersection_impl.1} parent=1 // pred_fallthru
      _
    // Predicated region
    $region42: #{_cone_intersection_impl.1} parent=1 // pred_check
      _
    $region43: #{_cone_intersection_impl.1} parent=1 // pred_check_branch
      %1604 = sbr.rel (0) target = $region45
    $region44: #{_cone_intersection_impl.1} parent=1 // pred_region
      %s1606 = ssub.s32 32, 32
      %1607 = vsyncadd [#allocation8], %s1606
      %s1609 = sshll.u32 [#allocation7], 4
      %s1610 = int_to_ptr.vmem [resolvable:$true] %s1609
      %1612 = dma.vmem_to_hbm [thread:$0]  %s1610, 32, %s9, [#allocation8]
    $region45: #{_cone_intersection_impl.1} parent=1 // pred_fallthru
      _
    // Predicated region
    $region46: #{_cone_intersection_impl.1} parent=1 // pred_check
      _
    $region47: #{_cone_intersection_impl.1} parent=1 // pred_check_branch
      %1614 = sbr.rel (0) target = $region49
    $region48: #{_cone_intersection_impl.1} parent=1 // pred_region
      %1615 = dma.done [#allocation5], 32
    $region49: #{_cone_intersection_impl.1} parent=1 // pred_fallthru
      _
    // Predicated region
    $region50: #{_cone_intersection_impl.1} parent=1 // pred_check
      _
    $region51: #{_cone_intersection_impl.1} parent=1 // pred_check_branch
      %1617 = sbr.rel (0) target = $region53
    $region52: #{_cone_intersection_impl.1} parent=1 // pred_region
      %1618 = dma.done [#allocation8], 32
    $region53: #{_cone_intersection_impl.1} parent=1 // pred_fallthru
      _
    %1619 = vsyncpa [#allocation4], 1
    %1620 = vsyncpa [#allocation5], 1
    %1621 = vsyncpa [#allocation8], 1

</llo_original>
